<compile_context>
chip_gen: v7x
topology: tpu7x:2x2x1
jax: 0.10.0
libtpu: 0.0.40
codegen_flags: <defaults>
</compile_context>

<pallas_src>
import functools

import jax
import jax.numpy as jnp
from jax.experimental import pallas as pl
from jax.experimental.pallas import tpu as pltpu

BN_EPS = 1e-5
LANE = 128
VMEM_LIMIT_BYTES = 32 * 1024 * 1024    # explicit scoped VMEM; safe on all gens
TILE_BUDGET_BYTES = 12 * 1024 * 1024   # double-buffered tile working-set target


# --------------------------------------------------------------------------- #
# Kernels
# --------------------------------------------------------------------------- #
def _conv_stats_kernel(p_ref, w_ref, conv_ref, sum_ref, sq_ref):
    """One row tile: (TILE_P, K) @ (K, C) on the MXU (bf16 in, f32 acc) and
    accumulation of global per-channel sum / sum-of-squares for BatchNorm
    training-mode batch statistics (accumulators are grid-resident)."""
    acc = jnp.dot(p_ref[...], w_ref[...], preferred_element_type=jnp.float32)
    conv_ref[...] = acc

    @pl.when(pl.program_id(0) == 0)
    def _():
        sum_ref[...] = jnp.zeros_like(sum_ref)
        sq_ref[...] = jnp.zeros_like(sq_ref)

    # Padded rows of the patch matrix are all-zero => they contribute exactly
    # zero to both sums, so the statistics over the true P rows are exact.
    sum_ref[...] += jnp.sum(acc, axis=0, keepdims=True)
    sq_ref[...] += jnp.sum(acc * acc, axis=0, keepdims=True)


def _affine_relu_kernel(x_ref, scale_ref, shift_ref, o_ref):
    """Folded BatchNorm (y = x * scale + shift) + ReLU on one row tile."""
    o_ref[...] = jnp.maximum(x_ref[...] * scale_ref[...] + shift_ref[...], 0.0)


def _conv_bias_relu_kernel(p_ref, w_ref, b_ref, o_ref):
    """batch_norm=False path: matmul + bias + ReLU on one row tile."""
    acc = jnp.dot(p_ref[...], w_ref[...], preferred_element_type=jnp.float32)
    o_ref[...] = jnp.maximum(acc + b_ref[...], 0.0)


# --------------------------------------------------------------------------- #
# Host-side helpers (plain JAX glue)
# --------------------------------------------------------------------------- #
def _round_up(x, m):
    return (x + m - 1) // m * m


def _choose_tile_p(p128, k_pad, c_pad):
    """Largest row tile whose double-buffered footprint fits the VMEM budget."""
    for t in (2048, 1024, 512, 256, 128):
        tile_bytes = 2 * (t * k_pad * 2 + t * c_pad * 4)  # bf16 in + f32 out, x2 bufs
        if t <= p128 and tile_bytes <= TILE_BUDGET_BYTES:
            return t
    return 128


def _im2col(x_nhwc, k):
    """(N,H,W,C) -> (N*Ho*Wo, k*k*C), valid padding, stride 1 (row-major (dy,dx,c))."""
    N, H, W, C = x_nhwc.shape
    Ho, Wo = H - k + 1, W - k + 1
    cols = []
    for dy in range(k):
        for dx in range(k):
            cols.append(x_nhwc[:, dy:dy + Ho, dx:dx + Wo, :])
    p = jnp.concatenate(cols, axis=-1)                    # (N, Ho, Wo, k*k*C)
    return p.reshape(N * Ho * Wo, k * k * C), (N, Ho, Wo)


def _run_stage(x_nhwc, w4d, bias, gamma, beta, batch_norm):
    """One conv stage. w4d: (k, k, Cin, Cout)."""
    k, _, _, cout = w4d.shape
    patches, (N, Ho, Wo) = _im2col(x_nhwc, k)
    P, K = patches.shape

    k_pad = _round_up(K, LANE)
    c_pad = _round_up(cout, LANE)
    tile_p = _choose_tile_p(_round_up(P, LANE), k_pad, c_pad)
    p_pad = _round_up(P, tile_p)
    n_tiles = p_pad // tile_p

    # Lane/contraction padding + bf16 feed for the MXU (accumulation stays f32).
    patches_p = jnp.zeros((p_pad, k_pad), jnp.bfloat16).at[:P, :K].set(
        patches.astype(jnp.bfloat16))
    w_p = jnp.zeros((k_pad, c_pad), jnp.bfloat16).at[:K, :cout].set(
        w4d.reshape(K, cout).astype(jnp.bfloat16))

    p_spec = pl.BlockSpec((tile_p, k_pad), lambda i: (i, 0))
    w_spec = pl.BlockSpec((k_pad, c_pad), lambda i: (0, 0))
    row_spec = pl.BlockSpec((tile_p, c_pad), lambda i: (i, 0))
    vec_spec = pl.BlockSpec((1, c_pad), lambda i: (0, 0))

    if not batch_norm:
        bias_p = jnp.zeros((1, c_pad), jnp.float32).at[:, :cout].set(bias)
        out = pl.pallas_call(
            _conv_bias_relu_kernel,
            out_shape=jax.ShapeDtypeStruct((p_pad, c_pad), jnp.float32),
            grid=(n_tiles,),
            in_specs=[p_spec, w_spec, vec_spec],
            out_specs=row_spec,
            compiler_params=pltpu.CompilerParams(
                dimension_semantics=("parallel",),
                vmem_limit_bytes=VMEM_LIMIT_BYTES),
        )(patches_p, w_p, bias_p)
        return out[:P, :cout].reshape(N, Ho, Wo, cout)

    # Pass 1: conv matmul (bias dropped — cancelled by BN mean subtraction)
    # + global per-channel sum / sum-of-squares.
    conv_out, ch_sum, ch_sq = pl.pallas_call(
        _conv_stats_kernel,
        out_shape=(
            jax.ShapeDtypeStruct((p_pad, c_pad), jnp.float32),
            jax.ShapeDtypeStruct((1, c_pad), jnp.float32),
            jax.ShapeDtypeStruct((1, c_pad), jnp.float32),
        ),
        grid=(n_tiles,),
        in_specs=[p_spec, w_spec],
        out_specs=(row_spec, vec_spec, vec_spec),
        compiler_params=pltpu.CompilerParams(
            dimension_semantics=("arbitrary",),   # stats blocks revisited across axis
            vmem_limit_bytes=VMEM_LIMIT_BYTES),
    )(patches_p, w_p)

    # Fold BN (training-mode batch stats over the TRUE P rows) + gamma/beta into
    # one scale/shift.  Tiny (1, C) math in plain JAX between the two passes.
    inv_n = 1.0 / float(P)
    mean = ch_sum * inv_n
    var = jnp.maximum(ch_sq * inv_n - mean * mean, 0.0)   # clamp against cancellation
    gamma_p = jnp.zeros((1, c_pad), jnp.float32).at[:, :cout].set(gamma)
    beta_p = jnp.zeros((1, c_pad), jnp.float32).at[:, :cout].set(beta)
    scale = gamma_p * jax.lax.rsqrt(var + BN_EPS)
    shift = beta_p - mean * scale

    # Pass 2: y = conv * scale + shift, then ReLU — row-parallel, lane-dense stores.
    out = pl.pallas_call(
        _affine_relu_kernel,
        out_shape=jax.ShapeDtypeStruct((p_pad, c_pad), jnp.float32),
        grid=(n_tiles,),
        in_specs=[row_spec, vec_spec, vec_spec],
        out_specs=row_spec,
        compiler_params=pltpu.CompilerParams(
            dimension_semantics=("parallel",),
            vmem_limit_bytes=VMEM_LIMIT_BYTES),
    )(conv_out, scale, shift)
    return out[:P, :cout].reshape(N, Ho, Wo, cout)


# --------------------------------------------------------------------------- #
# Module wrapper
# --------------------------------------------------------------------------- #
class DownsamplingBlockPallas:
    """JAX/Pallas equivalent of the PyTorch DownsamplingBlock (ReLU activation,
    BatchNorm2d modeled in training mode with shared gamma/beta, like the
    reused self.bnorm in the PyTorch module)."""

    def __init__(self, in_channels, out_channels, kernel_size, batch_norm=True, seed=0):
        self.in_channels = in_channels
        self.out_channels = out_channels
        self.kernel_size = kernel_size
        self.batch_norm = batch_norm

        key = jax.random.PRNGKey(seed)
        k1, k2, k3, k4 = jax.random.split(key, 4)
        k = kernel_size
        fan1 = in_channels * k * k
        b1 = 1.0 / jnp.sqrt(fan1)
        self.w1 = jax.random.uniform(k1, (k, k, in_channels, out_channels),
                                     jnp.float32, -b1, b1)
        self.b1 = jax.random.uniform(k2, (1, out_channels), jnp.float32, -b1, b1)
        fan2 = out_channels * k * k
        b2 = 1.0 / jnp.sqrt(fan2)
        self.w2 = jax.random.uniform(k3, (k, k, out_channels, out_channels),
                                     jnp.float32, -b2, b2)
        self.b2 = jax.random.uniform(k4, (1, out_channels), jnp.float32, -b2, b2)
        self.gamma = jnp.ones((1, out_channels), jnp.float32)
        self.beta = jnp.zeros((1, out_channels), jnp.float32)

    @functools.partial(jax.jit, static_argnums=0)
    def __call__(self, x_nchw):
        # NCHW (PyTorch) -> NHWC for the kernel layout
        x = jnp.transpose(x_nchw, (0, 2, 3, 1)).astype(jnp.float32)
        x = _run_stage(x, self.w1, self.b1, self.gamma, self.beta, self.batch_norm)
        x = _run_stage(x, self.w2, self.b2, self.gamma, self.beta, self.batch_norm)
        return jnp.transpose(x, (0, 3, 1, 2))


# --------------------------------------------------------------------------- #
# Pure-JAX reference (same bf16 MXU feed) for a correctness check
# --------------------------------------------------------------------------- #
def _reference_forward(x_nchw, block):
    x = jnp.transpose(x_nchw, (0, 2, 3, 1)).astype(jnp.float32)

    def stage(x, w4d, bias):
        k, _, _, cout = w4d.shape
        p, (N, Ho, Wo) = _im2col(x, k)
        acc = jnp.dot(p.astype(jnp.bfloat16),
                      w4d.reshape(-1, cout).astype(jnp.bfloat16),
                      preferred_element_type=jnp.float32)
        if block.batch_norm:
            acc = acc + bias   # faithful PyTorch order (cancelled by BN anyway)
            mean = jnp.mean(acc, axis=0, keepdims=True)
            var = jnp.mean(jnp.square(acc - mean), axis=0, keepdims=True)
            y = (acc - mean) * jax.lax.rsqrt(var + BN_EPS) * block.gamma + block.beta
        else:
            y = acc + bias
        return jnp.maximum(y, 0.0).reshape(N, Ho, Wo, cout)

    x = stage(x, block.w1, block.b1)
    x = stage(x, block.w2, block.b2)
    return jnp.transpose(x, (0, 3, 1, 2))


if __name__ == "__main__":
    N, Cin, H, W = 2, 4, 16, 16
    Cout, K = 8, 3

    key = jax.random.PRNGKey(0)
    x = jax.random.normal(key, (N, Cin, H, W), dtype=jnp.float32)

    for use_bn in (True, False):
        block = DownsamplingBlockPallas(Cin, Cout, K, batch_norm=use_bn, seed=0)
        out = jax.block_until_ready(block(x))

        expected_shape = (N, Cout, H - 2 * (K - 1), W - 2 * (K - 1))  # (2, 8, 12, 12)
        assert out.shape == expected_shape, (out.shape, expected_shape)
        assert bool(jnp.all(jnp.isfinite(out)))
        assert bool(jnp.all(out >= 0.0))  # ReLU output

        ref = _reference_forward(x, block)
        err = float(jnp.max(jnp.abs(out - ref)))
        assert err < 5e-2, f"max abs err {err} (batch_norm={use_bn})"

    print("KERNEL_OK")
</pallas_src>

<mosaic_0001>
module attributes {stable_mosaic.version = 11 : i64} {
  func.func @_conv_stats_kernel(%arg0: i32, %arg1: memref<512x128xbf16, #tpu.memory_space<vmem>>, %arg2: memref<128x128xbf16, #tpu.memory_space<vmem>>, %arg3: memref<512x128xf32, #tpu.memory_space<vmem>>, %arg4: memref<1x128xf32, #tpu.memory_space<vmem>>, %arg5: memref<1x128xf32, #tpu.memory_space<vmem>>) attributes {dimension_semantics = [#tpu.dimension_semantics<arbitrary>], iteration_bounds = array<i64: 1>, scalar_prefetch = 0 : i64, scratch_operands = 0 : i64, tpu.core_type = #tpu.core_type<tc>, window_params = [{transform_indices = @transform_0, window_bounds = array<i64: 512, 128>}, {pipeline_mode = #tpu.pipeline_mode<synchronous>, transform_indices = @transform_1, window_bounds = array<i64: 128, 128>}, {transform_indices = @transform_2, window_bounds = array<i64: 512, 128>}, {pipeline_mode = #tpu.pipeline_mode<synchronous>, transform_indices = @transform_3, window_bounds = array<i64: 1, 128>}, {pipeline_mode = #tpu.pipeline_mode<synchronous>, transform_indices = @transform_4, window_bounds = array<i64: 1, 128>}]} {
    %c0 = arith.constant 0 : index
    %c0_0 = arith.constant 0 : index
    %0 = vector.load %arg1[%c0, %c0_0] : memref<512x128xbf16, #tpu.memory_space<vmem>>, vector<512x128xbf16>
    %c0_1 = arith.constant 0 : index
    %c0_2 = arith.constant 0 : index
    %1 = vector.load %arg2[%c0_1, %c0_2] : memref<128x128xbf16, #tpu.memory_space<vmem>>, vector<128x128xbf16>
    %cst = arith.constant dense<0.000000e+00> : vector<512x128xf32>
    %2 = tpu.matmul %0, %1, %cst {dimension_numbers = #tpu.dot_dimension_numbers<[1], [0], [0], [1], [0, 0, 1, 1], [], []>} : vector<512x128xbf16>, vector<128x128xbf16>, vector<512x128xf32> -> vector<512x128xf32>
    %c0_3 = arith.constant 0 : index
    %c0_4 = arith.constant 0 : index
    %3 = vector.load %arg3[%c0_3, %c0_4] : memref<512x128xf32, #tpu.memory_space<vmem>>, vector<512x128xf32>
    tpu.vector_store %arg3[%c0_3, %c0_4], %2 {strides = array<i32>} : memref<512x128xf32, #tpu.memory_space<vmem>>, vector<512x128xf32>,
    %c0_i32 = arith.constant 0 : i32
    %4 = arith.cmpi eq, %arg0, %c0_i32 : i32
    %5 = arith.extui %4 : i1 to i32
    %c0_i32_5 = arith.constant 0 : i32
    %6 = arith.cmpi ne, %5, %c0_i32_5 : i32
    scf.if %6 {
      %cst_16 = arith.constant 0.000000e+00 : f32
      %18 = vector.broadcast %cst_16 : f32 to vector<1x128xf32>
      %c0_17 = arith.constant 0 : index
      %c0_18 = arith.constant 0 : index
      %19 = vector.load %arg4[%c0_17, %c0_18] : memref<1x128xf32, #tpu.memory_space<vmem>>, vector<1x128xf32>
      tpu.vector_store %arg4[%c0_17, %c0_18], %18 {strides = array<i32>} : memref<1x128xf32, #tpu.memory_space<vmem>>, vector<1x128xf32>,
      %cst_19 = arith.constant 0.000000e+00 : f32
      %20 = vector.broadcast %cst_19 : f32 to vector<1x128xf32>
      %c0_20 = arith.constant 0 : index
      %c0_21 = arith.constant 0 : index
      %21 = vector.load %arg5[%c0_20, %c0_21] : memref<1x128xf32, #tpu.memory_space<vmem>>, vector<1x128xf32>
      tpu.vector_store %arg5[%c0_20, %c0_21], %20 {strides = array<i32>} : memref<1x128xf32, #tpu.memory_space<vmem>>, vector<1x128xf32>,
    } else {
    }
    %c0_6 = arith.constant 0 : index
    %c0_7 = arith.constant 0 : index
    %7 = vector.load %arg4[%c0_6, %c0_7] : memref<1x128xf32, #tpu.memory_space<vmem>>, vector<1x128xf32>
    %cst_8 = arith.constant dense<0.000000e+00> : vector<128xf32>
    %8 = vector.multi_reduction <add>, %2, %cst_8 [0] : vector<512x128xf32> to vector<128xf32>
    %9 = vector.shape_cast %8 : vector<128xf32> to vector<1x128xf32>
    %10 = arith.addf %7, %9 : vector<1x128xf32>
    %c0_9 = arith.constant 0 : index
    %c0_10 = arith.constant 0 : index
    %11 = vector.load %arg4[%c0_9, %c0_10] : memref<1x128xf32, #tpu.memory_space<vmem>>, vector<1x128xf32>
    tpu.vector_store %arg4[%c0_9, %c0_10], %10 {strides = array<i32>} : memref<1x128xf32, #tpu.memory_space<vmem>>, vector<1x128xf32>,
    %c0_11 = arith.constant 0 : index
    %c0_12 = arith.constant 0 : index
    %12 = vector.load %arg5[%c0_11, %c0_12] : memref<1x128xf32, #tpu.memory_space<vmem>>, vector<1x128xf32>
    %13 = arith.mulf %2, %2 : vector<512x128xf32>
    %cst_13 = arith.constant dense<0.000000e+00> : vector<128xf32>
    %14 = vector.multi_reduction <add>, %13, %cst_13 [0] : vector<512x128xf32> to vector<128xf32>
    %15 = vector.shape_cast %14 : vector<128xf32> to vector<1x128xf32>
    %16 = arith.addf %12, %15 : vector<1x128xf32>
    %c0_14 = arith.constant 0 : index
    %c0_15 = arith.constant 0 : index
    %17 = vector.load %arg5[%c0_14, %c0_15] : memref<1x128xf32, #tpu.memory_space<vmem>>, vector<1x128xf32>
    tpu.vector_store %arg5[%c0_14, %c0_15], %16 {strides = array<i32>} : memref<1x128xf32, #tpu.memory_space<vmem>>, vector<1x128xf32>,
    return
  }
  func.func @transform_0(%arg0: i32) -> (i32, i32) {
    %c0_i32 = arith.constant 0 : i32
    %c0_i32_0 = arith.constant 0 : i32
    return %arg0, %c0_i32 : i32, i32
  }
  func.func @transform_1(%arg0: i32) -> (i32, i32) {
    %c0_i32 = arith.constant 0 : i32
    %c0_i32_0 = arith.constant 0 : i32
    %c0_i32_1 = arith.constant 0 : i32
    return %c0_i32, %c0_i32_0 : i32, i32
  }
  func.func @transform_2(%arg0: i32) -> (i32, i32) {
    %c0_i32 = arith.constant 0 : i32
    %c0_i32_0 = arith.constant 0 : i32
    return %arg0, %c0_i32 : i32, i32
  }
  func.func @transform_3(%arg0: i32) -> (i32, i32) {
    %c0_i32 = arith.constant 0 : i32
    %c0_i32_0 = arith.constant 0 : i32
    %c0_i32_1 = arith.constant 0 : i32
    return %c0_i32, %c0_i32_0 : i32, i32
  }
  func.func @transform_4(%arg0: i32) -> (i32, i32) {
    %c0_i32 = arith.constant 0 : i32
    %c0_i32_0 = arith.constant 0 : i32
    %c0_i32_1 = arith.constant 0 : i32
    return %c0_i32, %c0_i32_0 : i32, i32
  }
}

module attributes {stable_mosaic.version = 11 : i64} {
  func.func @_affine_relu_kernel(%arg0: i32, %arg1: memref<512x128xf32, #tpu.memory_space<vmem>>, %arg2: memref<1x128xf32, #tpu.memory_space<vmem>>, %arg3: memref<1x128xf32, #tpu.memory_space<vmem>>, %arg4: memref<512x128xf32, #tpu.memory_space<vmem>>) attributes {dimension_semantics = [#tpu.dimension_semantics<parallel>], iteration_bounds = array<i64: 1>, scalar_prefetch = 0 : i64, scratch_operands = 0 : i64, tpu.core_type = #tpu.core_type<tc>, window_params = [{transform_indices = @transform_0, window_bounds = array<i64: 512, 128>}, {pipeline_mode = #tpu.pipeline_mode<synchronous>, transform_indices = @transform_1, window_bounds = array<i64: 1, 128>}, {pipeline_mode = #tpu.pipeline_mode<synchronous>, transform_indices = @transform_2, window_bounds = array<i64: 1, 128>}, {transform_indices = @transform_3, window_bounds = array<i64: 512, 128>}]} {
    %c0 = arith.constant 0 : index
    %c0_0 = arith.constant 0 : index
    %0 = vector.load %arg1[%c0, %c0_0] : memref<512x128xf32, #tpu.memory_space<vmem>>, vector<512x128xf32>
    %c0_1 = arith.constant 0 : index
    %c0_2 = arith.constant 0 : index
    %1 = vector.load %arg2[%c0_1, %c0_2] : memref<1x128xf32, #tpu.memory_space<vmem>>, vector<1x128xf32>
    %2 = vector.broadcast %1 : vector<1x128xf32> to vector<512x128xf32>
    %3 = arith.mulf %0, %2 : vector<512x128xf32>
    %c0_3 = arith.constant 0 : index
    %c0_4 = arith.constant 0 : index
    %4 = vector.load %arg3[%c0_3, %c0_4] : memref<1x128xf32, #tpu.memory_space<vmem>>, vector<1x128xf32>
    %5 = vector.broadcast %4 : vector<1x128xf32> to vector<512x128xf32>
    %6 = arith.addf %3, %5 : vector<512x128xf32>
    %cst = arith.constant 0.000000e+00 : f32
    %7 = vector.broadcast %cst : f32 to vector<512x128xf32>
    %8 = arith.maximumf %6, %7 : vector<512x128xf32>
    %c0_5 = arith.constant 0 : index
    %c0_6 = arith.constant 0 : index
    %9 = vector.load %arg4[%c0_5, %c0_6] : memref<512x128xf32, #tpu.memory_space<vmem>>, vector<512x128xf32>
    tpu.vector_store %arg4[%c0_5, %c0_6], %8 {strides = array<i32>} : memref<512x128xf32, #tpu.memory_space<vmem>>, vector<512x128xf32>,
    return
  }
  func.func @transform_0(%arg0: i32) -> (i32, i32) {
    %c0_i32 = arith.constant 0 : i32
    %c0_i32_0 = arith.constant 0 : i32
    return %arg0, %c0_i32 : i32, i32
  }
  func.func @transform_1(%arg0: i32) -> (i32, i32) {
    %c0_i32 = arith.constant 0 : i32
    %c0_i32_0 = arith.constant 0 : i32
    %c0_i32_1 = arith.constant 0 : i32
    return %c0_i32, %c0_i32_0 : i32, i32
  }
  func.func @transform_2(%arg0: i32) -> (i32, i32) {
    %c0_i32 = arith.constant 0 : i32
    %c0_i32_0 = arith.constant 0 : i32
    %c0_i32_1 = arith.constant 0 : i32
    return %c0_i32, %c0_i32_0 : i32, i32
  }
  func.func @transform_3(%arg0: i32) -> (i32, i32) {
    %c0_i32 = arith.constant 0 : i32
    %c0_i32_0 = arith.constant 0 : i32
    return %arg0, %c0_i32 : i32, i32
  }
}

module attributes {stable_mosaic.version = 11 : i64} {
  func.func @_conv_stats_kernel(%arg0: i32, %arg1: memref<256x128xbf16, #tpu.memory_space<vmem>>, %arg2: memref<128x128xbf16, #tpu.memory_space<vmem>>, %arg3: memref<256x128xf32, #tpu.memory_space<vmem>>, %arg4: memref<1x128xf32, #tpu.memory_space<vmem>>, %arg5: memref<1x128xf32, #tpu.memory_space<vmem>>) attributes {dimension_semantics = [#tpu.dimension_semantics<arbitrary>], iteration_bounds = array<i64: 2>, scalar_prefetch = 0 : i64, scratch_operands = 0 : i64, tpu.core_type = #tpu.core_type<tc>, window_params = [{transform_indices = @transform_0, window_bounds = array<i64: 256, 128>}, {pipeline_mode = #tpu.pipeline_mode<synchronous>, transform_indices = @transform_1, window_bounds = array<i64: 128, 128>}, {transform_indices = @transform_2, window_bounds = array<i64: 256, 128>}, {pipeline_mode = #tpu.pipeline_mode<synchronous>, transform_indices = @transform_3, window_bounds = array<i64: 1, 128>}, {pipeline_mode = #tpu.pipeline_mode<synchronous>, transform_indices = @transform_4, window_bounds = array<i64: 1, 128>}]} {
    %c0 = arith.constant 0 : index
    %c0_0 = arith.constant 0 : index
    %0 = vector.load %arg1[%c0, %c0_0] : memref<256x128xbf16, #tpu.memory_space<vmem>>, vector<256x128xbf16>
    %c0_1 = arith.constant 0 : index
    %c0_2 = arith.constant 0 : index
    %1 = vector.load %arg2[%c0_1, %c0_2] : memref<128x128xbf16, #tpu.memory_space<vmem>>, vector<128x128xbf16>
    %cst = arith.constant dense<0.000000e+00> : vector<256x128xf32>
    %2 = tpu.matmul %0, %1, %cst {dimension_numbers = #tpu.dot_dimension_numbers<[1], [0], [0], [1], [0, 0, 1, 1], [], []>} : vector<256x128xbf16>, vector<128x128xbf16>, vector<256x128xf32> -> vector<256x128xf32>
    %c0_3 = arith.constant 0 : index
    %c0_4 = arith.constant 0 : index
    %3 = vector.load %arg3[%c0_3, %c0_4] : memref<256x128xf32, #tpu.memory_space<vmem>>, vector<256x128xf32>
    tpu.vector_store %arg3[%c0_3, %c0_4], %2 {strides = array<i32>} : memref<256x128xf32, #tpu.memory_space<vmem>>, vector<256x128xf32>,
    %c0_i32 = arith.constant 0 : i32
    %4 = arith.cmpi eq, %arg0, %c0_i32 : i32
    %5 = arith.extui %4 : i1 to i32
    %c0_i32_5 = arith.constant 0 : i32
    %6 = arith.cmpi ne, %5, %c0_i32_5 : i32
    scf.if %6 {
      %cst_16 = arith.constant 0.000000e+00 : f32
      %18 = vector.broadcast %cst_16 : f32 to vector<1x128xf32>
      %c0_17 = arith.constant 0 : index
      %c0_18 = arith.constant 0 : index
      %19 = vector.load %arg4[%c0_17, %c0_18] : memref<1x128xf32, #tpu.memory_space<vmem>>, vector<1x128xf32>
      tpu.vector_store %arg4[%c0_17, %c0_18], %18 {strides = array<i32>} : memref<1x128xf32, #tpu.memory_space<vmem>>, vector<1x128xf32>,
      %cst_19 = arith.constant 0.000000e+00 : f32
      %20 = vector.broadcast %cst_19 : f32 to vector<1x128xf32>
      %c0_20 = arith.constant 0 : index
      %c0_21 = arith.constant 0 : index
      %21 = vector.load %arg5[%c0_20, %c0_21] : memref<1x128xf32, #tpu.memory_space<vmem>>, vector<1x128xf32>
      tpu.vector_store %arg5[%c0_20, %c0_21], %20 {strides = array<i32>} : memref<1x128xf32, #tpu.memory_space<vmem>>, vector<1x128xf32>,
    } else {
    }
    %c0_6 = arith.constant 0 : index
    %c0_7 = arith.constant 0 : index
    %7 = vector.load %arg4[%c0_6, %c0_7] : memref<1x128xf32, #tpu.memory_space<vmem>>, vector<1x128xf32>
    %cst_8 = arith.constant dense<0.000000e+00> : vector<128xf32>
    %8 = vector.multi_reduction <add>, %2, %cst_8 [0] : vector<256x128xf32> to vector<128xf32>
    %9 = vector.shape_cast %8 : vector<128xf32> to vector<1x128xf32>
    %10 = arith.addf %7, %9 : vector<1x128xf32>
    %c0_9 = arith.constant 0 : index
    %c0_10 = arith.constant 0 : index
    %11 = vector.load %arg4[%c0_9, %c0_10] : memref<1x128xf32, #tpu.memory_space<vmem>>, vector<1x128xf32>
    tpu.vector_store %arg4[%c0_9, %c0_10], %10 {strides = array<i32>} : memref<1x128xf32, #tpu.memory_space<vmem>>, vector<1x128xf32>,
    %c0_11 = arith.constant 0 : index
    %c0_12 = arith.constant 0 : index
    %12 = vector.load %arg5[%c0_11, %c0_12] : memref<1x128xf32, #tpu.memory_space<vmem>>, vector<1x128xf32>
    %13 = arith.mulf %2, %2 : vector<256x128xf32>
    %cst_13 = arith.constant dense<0.000000e+00> : vector<128xf32>
    %14 = vector.multi_reduction <add>, %13, %cst_13 [0] : vector<256x128xf32> to vector<128xf32>
    %15 = vector.shape_cast %14 : vector<128xf32> to vector<1x128xf32>
    %16 = arith.addf %12, %15 : vector<1x128xf32>
    %c0_14 = arith.constant 0 : index
    %c0_15 = arith.constant 0 : index
    %17 = vector.load %arg5[%c0_14, %c0_15] : memref<1x128xf32, #tpu.memory_space<vmem>>, vector<1x128xf32>
    tpu.vector_store %arg5[%c0_14, %c0_15], %16 {strides = array<i32>} : memref<1x128xf32, #tpu.memory_space<vmem>>, vector<1x128xf32>,
    return
  }
  func.func @transform_0(%arg0: i32) -> (i32, i32) {
    %c0_i32 = arith.constant 0 : i32
    %c0_i32_0 = arith.constant 0 : i32
    return %arg0, %c0_i32 : i32, i32
  }
  func.func @transform_1(%arg0: i32) -> (i32, i32) {
    %c0_i32 = arith.constant 0 : i32
    %c0_i32_0 = arith.constant 0 : i32
    %c0_i32_1 = arith.constant 0 : i32
    return %c0_i32, %c0_i32_0 : i32, i32
  }
  func.func @transform_2(%arg0: i32) -> (i32, i32) {
    %c0_i32 = arith.constant 0 : i32
    %c0_i32_0 = arith.constant 0 : i32
    return %arg0, %c0_i32 : i32, i32
  }
  func.func @transform_3(%arg0: i32) -> (i32, i32) {
    %c0_i32 = arith.constant 0 : i32
    %c0_i32_0 = arith.constant 0 : i32
    %c0_i32_1 = arith.constant 0 : i32
    return %c0_i32, %c0_i32_0 : i32, i32
  }
  func.func @transform_4(%arg0: i32) -> (i32, i32) {
    %c0_i32 = arith.constant 0 : i32
    %c0_i32_0 = arith.constant 0 : i32
    %c0_i32_1 = arith.constant 0 : i32
    return %c0_i32, %c0_i32_0 : i32, i32
  }
}

module attributes {stable_mosaic.version = 11 : i64} {
  func.func @_affine_relu_kernel(%arg0: i32, %arg1: memref<256x128xf32, #tpu.memory_space<vmem>>, %arg2: memref<1x128xf32, #tpu.memory_space<vmem>>, %arg3: memref<1x128xf32, #tpu.memory_space<vmem>>, %arg4: memref<256x128xf32, #tpu.memory_space<vmem>>) attributes {dimension_semantics = [#tpu.dimension_semantics<parallel>], iteration_bounds = array<i64: 2>, scalar_prefetch = 0 : i64, scratch_operands = 0 : i64, tpu.core_type = #tpu.core_type<tc>, window_params = [{transform_indices = @transform_0, window_bounds = array<i64: 256, 128>}, {pipeline_mode = #tpu.pipeline_mode<synchronous>, transform_indices = @transform_1, window_bounds = array<i64: 1, 128>}, {pipeline_mode = #tpu.pipeline_mode<synchronous>, transform_indices = @transform_2, window_bounds = array<i64: 1, 128>}, {transform_indices = @transform_3, window_bounds = array<i64: 256, 128>}]} {
    %c0 = arith.constant 0 : index
    %c0_0 = arith.constant 0 : index
    %0 = vector.load %arg1[%c0, %c0_0] : memref<256x128xf32, #tpu.memory_space<vmem>>, vector<256x128xf32>
    %c0_1 = arith.constant 0 : index
    %c0_2 = arith.constant 0 : index
    %1 = vector.load %arg2[%c0_1, %c0_2] : memref<1x128xf32, #tpu.memory_space<vmem>>, vector<1x128xf32>
    %2 = vector.broadcast %1 : vector<1x128xf32> to vector<256x128xf32>
    %3 = arith.mulf %0, %2 : vector<256x128xf32>
    %c0_3 = arith.constant 0 : index
    %c0_4 = arith.constant 0 : index
    %4 = vector.load %arg3[%c0_3, %c0_4] : memref<1x128xf32, #tpu.memory_space<vmem>>, vector<1x128xf32>
    %5 = vector.broadcast %4 : vector<1x128xf32> to vector<256x128xf32>
    %6 = arith.addf %3, %5 : vector<256x128xf32>
    %cst = arith.constant 0.000000e+00 : f32
    %7 = vector.broadcast %cst : f32 to vector<256x128xf32>
    %8 = arith.maximumf %6, %7 : vector<256x128xf32>
    %c0_5 = arith.constant 0 : index
    %c0_6 = arith.constant 0 : index
    %9 = vector.load %arg4[%c0_5, %c0_6] : memref<256x128xf32, #tpu.memory_space<vmem>>, vector<256x128xf32>
    tpu.vector_store %arg4[%c0_5, %c0_6], %8 {strides = array<i32>} : memref<256x128xf32, #tpu.memory_space<vmem>>, vector<256x128xf32>,
    return
  }
  func.func @transform_0(%arg0: i32) -> (i32, i32) {
    %c0_i32 = arith.constant 0 : i32
    %c0_i32_0 = arith.constant 0 : i32
    return %arg0, %c0_i32 : i32, i32
  }
  func.func @transform_1(%arg0: i32) -> (i32, i32) {
    %c0_i32 = arith.constant 0 : i32
    %c0_i32_0 = arith.constant 0 : i32
    %c0_i32_1 = arith.constant 0 : i32
    return %c0_i32, %c0_i32_0 : i32, i32
  }
  func.func @transform_2(%arg0: i32) -> (i32, i32) {
    %c0_i32 = arith.constant 0 : i32
    %c0_i32_0 = arith.constant 0 : i32
    %c0_i32_1 = arith.constant 0 : i32
    return %c0_i32, %c0_i32_0 : i32, i32
  }
  func.func @transform_3(%arg0: i32) -> (i32, i32) {
    %c0_i32 = arith.constant 0 : i32
    %c0_i32_0 = arith.constant 0 : i32
    return %arg0, %c0_i32 : i32, i32
  }
}

</mosaic_0001>

<llo_original>
// kernel: a_call__.4
$region0: #{a_call__.4}
  #allocation0 [shape = 'u32[]', space=smem, size = 0x4, offset = 0x4, fixed_abs, tag = 'smem constant byte address 0x4 - core index']
  #allocation1 [shape = 'u32[144,128]{1,0:T(1,128)}', space=vmem, size = 0x12000, scoped, tag = 'internal scratch']
  %s0 = inlined_call_operand.vmem [shape: bf16[512,128], index: 0, kind: input, shape index: {}]
  %s1 = inlined_call_operand.vmem [shape: bf16[128,128], index: 1, kind: input, shape index: {}]
  %s2 = inlined_call_operand.vmem [shape: f32[512,128], index: 2, kind: output, shape index: {0}]
  %s3 = inlined_call_operand.vmem [shape: f32[1,128], index: 3, kind: output, shape index: {1}]
  %s4 = inlined_call_operand.vmem [shape: f32[1,128], index: 4, kind: output, shape index: {2}]
  %5 = xla_tuple %s2, %s3, %s4
  %s6 = sld [smem:[#allocation0]]
  $region38: #{a_call__.4} parent=0
    _
  %s8 = ssub.s32 1, %s6
  %s9 = scalar_select 0, %s8, %s6
  // Predicated region
  $region2: #{a_call__.4} parent=0 // pred_check
    _
  $region3: #{a_call__.4} parent=0 // pred_check_branch
    %11 = sbr.rel (0) target = $region5
  $region4: #{a_call__.4} parent=0 // pred_region
    _
  $region5: #{a_call__.4} parent=0 // pred_fallthru
    _
  // Predicated region
  $region6: #{a_call__.4} parent=0 // pred_check
    _
  $region7: #{a_call__.4} parent=0 // pred_check_branch
    %13 = sbr.rel (0) target = $region9
  $region8: #{a_call__.4} parent=0 // pred_region
    _
  $region9: #{a_call__.4} parent=0 // pred_fallthru
    _
  %v15 = vld [vmem:[%s0] sm:$0xf]
  %v16 = vld [vmem:[%s0 + $0x4] sm:$0xf]
  %v17 = vld [vmem:[%s0 + $0x8] sm:$0xf]
  %v18 = vld [vmem:[%s0 + $0xc] sm:$0xf]
  %v19 = vld [vmem:[%s0 + $0x10] sm:$0xf]
  %v20 = vld [vmem:[%s0 + $0x14] sm:$0xf]
  %v21 = vld [vmem:[%s0 + $0x18] sm:$0xf]
  %v22 = vld [vmem:[%s0 + $0x1c] sm:$0xf]
  %v23 = vld [vmem:[%s0 + $0x20] sm:$0xf]
  %v24 = vld [vmem:[%s0 + $0x24] sm:$0xf]
  %v25 = vld [vmem:[%s0 + $0x28] sm:$0xf]
  %v26 = vld [vmem:[%s0 + $0x2c] sm:$0xf]
  %v27 = vld [vmem:[%s0 + $0x30] sm:$0xf]
  %v28 = vld [vmem:[%s0 + $0x34] sm:$0xf]
  %v29 = vld [vmem:[%s0 + $0x38] sm:$0xf]
  %v30 = vld [vmem:[%s0 + $0x3c] sm:$0xf]
  %v31 = vld [vmem:[%s0 + $0x40] sm:$0xf]
  %v32 = vld [vmem:[%s0 + $0x44] sm:$0xf]
  %v33 = vld [vmem:[%s0 + $0x48] sm:$0xf]
  %v34 = vld [vmem:[%s0 + $0x4c] sm:$0xf]
  %v35 = vld [vmem:[%s0 + $0x50] sm:$0xf]
  %v36 = vld [vmem:[%s0 + $0x54] sm:$0xf]
  %v37 = vld [vmem:[%s0 + $0x58] sm:$0xf]
  %v38 = vld [vmem:[%s0 + $0x5c] sm:$0xf]
  %v39 = vld [vmem:[%s0 + $0x60] sm:$0xf]
  %v40 = vld [vmem:[%s0 + $0x64] sm:$0xf]
  %v41 = vld [vmem:[%s0 + $0x68] sm:$0xf]
  %v42 = vld [vmem:[%s0 + $0x6c] sm:$0xf]
  %v43 = vld [vmem:[%s0 + $0x70] sm:$0xf]
  %v44 = vld [vmem:[%s0 + $0x74] sm:$0xf]
  %v45 = vld [vmem:[%s0 + $0x78] sm:$0xf]
  %v46 = vld [vmem:[%s0 + $0x7c] sm:$0xf]
  %v47 = vld [vmem:[%s0 + $0x80] sm:$0xf]
  %v48 = vld [vmem:[%s0 + $0x84] sm:$0xf]
  %v49 = vld [vmem:[%s0 + $0x88] sm:$0xf]
  %v50 = vld [vmem:[%s0 + $0x8c] sm:$0xf]
  %v51 = vld [vmem:[%s0 + $0x90] sm:$0xf]
  %v52 = vld [vmem:[%s0 + $0x94] sm:$0xf]
  %v53 = vld [vmem:[%s0 + $0x98] sm:$0xf]
  %v54 = vld [vmem:[%s0 + $0x9c] sm:$0xf]
  %v55 = vld [vmem:[%s0 + $0xa0] sm:$0xf]
  %v56 = vld [vmem:[%s0 + $0xa4] sm:$0xf]
  %v57 = vld [vmem:[%s0 + $0xa8] sm:$0xf]
  %v58 = vld [vmem:[%s0 + $0xac] sm:$0xf]
  %v59 = vld [vmem:[%s0 + $0xb0] sm:$0xf]
  %v60 = vld [vmem:[%s0 + $0xb4] sm:$0xf]
  %v61 = vld [vmem:[%s0 + $0xb8] sm:$0xf]
  %v62 = vld [vmem:[%s0 + $0xbc] sm:$0xf]
  %v63 = vld [vmem:[%s0 + $0xc0] sm:$0xf]
  %v64 = vld [vmem:[%s0 + $0xc4] sm:$0xf]
  %v65 = vld [vmem:[%s0 + $0xc8] sm:$0xf]
  %v66 = vld [vmem:[%s0 + $0xcc] sm:$0xf]
  %v67 = vld [vmem:[%s0 + $0xd0] sm:$0xf]
  %v68 = vld [vmem:[%s0 + $0xd4] sm:$0xf]
  %v69 = vld [vmem:[%s0 + $0xd8] sm:$0xf]
  %v70 = vld [vmem:[%s0 + $0xdc] sm:$0xf]
  %v71 = vld [vmem:[%s0 + $0xe0] sm:$0xf]
  %v72 = vld [vmem:[%s0 + $0xe4] sm:$0xf]
  %v73 = vld [vmem:[%s0 + $0xe8] sm:$0xf]
  %v74 = vld [vmem:[%s0 + $0xec] sm:$0xf]
  %v75 = vld [vmem:[%s0 + $0xf0] sm:$0xf]
  %v76 = vld [vmem:[%s0 + $0xf4] sm:$0xf]
  %v77 = vld [vmem:[%s0 + $0xf8] sm:$0xf]
  %v78 = vld [vmem:[%s0 + $0xfc] sm:$0xf]
  %v79 = vld [vmem:[%s1] sm:$0xf]
  %v80 = vld [vmem:[%s1 + $0x4] sm:$0xf]
  %v81 = vld [vmem:[%s1 + $0x8] sm:$0xf]
  %v82 = vld [vmem:[%s1 + $0xc] sm:$0xf]
  %v83 = vld [vmem:[%s1 + $0x10] sm:$0xf]
  %v84 = vld [vmem:[%s1 + $0x14] sm:$0xf]
  %v85 = vld [vmem:[%s1 + $0x18] sm:$0xf]
  %v86 = vld [vmem:[%s1 + $0x1c] sm:$0xf]
  %v87 = vld [vmem:[%s1 + $0x20] sm:$0xf]
  %v88 = vld [vmem:[%s1 + $0x24] sm:$0xf]
  %v89 = vld [vmem:[%s1 + $0x28] sm:$0xf]
  %v90 = vld [vmem:[%s1 + $0x2c] sm:$0xf]
  %v91 = vld [vmem:[%s1 + $0x30] sm:$0xf]
  %v92 = vld [vmem:[%s1 + $0x34] sm:$0xf]
  %v93 = vld [vmem:[%s1 + $0x38] sm:$0xf]
  %v94 = vld [vmem:[%s1 + $0x3c] sm:$0xf]
  %v159 = vunpack.c.l.b16 %v15
  %v160 = vunpack.c.l.b16 %v16
  %v161 = vunpack.c.l.b16 %v17
  %v162 = vunpack.c.l.b16 %v18
  %v163 = vunpack.c.l.b16 %v19
  %v164 = vunpack.c.l.b16 %v20
  %v165 = vunpack.c.l.b16 %v21
  %v166 = vunpack.c.l.b16 %v22
  %v167 = vunpack.c.l.b16 %v23
  %v168 = vunpack.c.l.b16 %v24
  %v169 = vunpack.c.l.b16 %v25
  %v170 = vunpack.c.l.b16 %v26
  %v171 = vunpack.c.l.b16 %v27
  %v172 = vunpack.c.l.b16 %v28
  %v173 = vunpack.c.l.b16 %v29
  %v174 = vunpack.c.l.b16 %v30
  %v175 = vunpack.c.l.b16 %v31
  %v176 = vunpack.c.l.b16 %v32
  %v177 = vunpack.c.l.b16 %v33
  %v178 = vunpack.c.l.b16 %v34
  %v179 = vunpack.c.l.b16 %v35
  %v180 = vunpack.c.l.b16 %v36
  %v181 = vunpack.c.l.b16 %v37
  %v182 = vunpack.c.l.b16 %v38
  %v183 = vunpack.c.l.b16 %v39
  %v184 = vunpack.c.l.b16 %v40
  %v185 = vunpack.c.l.b16 %v41
  %v186 = vunpack.c.l.b16 %v42
  %v187 = vunpack.c.l.b16 %v43
  %v188 = vunpack.c.l.b16 %v44
  %v189 = vunpack.c.l.b16 %v45
  %v190 = vunpack.c.l.b16 %v46
  %v191 = vunpack.c.l.b16 %v47
  %v192 = vunpack.c.l.b16 %v48
  %v193 = vunpack.c.l.b16 %v49
  %v194 = vunpack.c.l.b16 %v50
  %v195 = vunpack.c.l.b16 %v51
  %v196 = vunpack.c.l.b16 %v52
  %v197 = vunpack.c.l.b16 %v53
  %v198 = vunpack.c.l.b16 %v54
  %v199 = vunpack.c.l.b16 %v55
  %v200 = vunpack.c.l.b16 %v56
  %v201 = vunpack.c.l.b16 %v57
  %v202 = vunpack.c.l.b16 %v58
  %v203 = vunpack.c.l.b16 %v59
  %v204 = vunpack.c.l.b16 %v60
  %v205 = vunpack.c.l.b16 %v61
  %v206 = vunpack.c.l.b16 %v62
  %v207 = vunpack.c.l.b16 %v63
  %v208 = vunpack.c.l.b16 %v64
  %v209 = vunpack.c.l.b16 %v65
  %v210 = vunpack.c.l.b16 %v66
  %v211 = vunpack.c.l.b16 %v67
  %v212 = vunpack.c.l.b16 %v68
  %v213 = vunpack.c.l.b16 %v69
  %v214 = vunpack.c.l.b16 %v70
  %v215 = vunpack.c.l.b16 %v71
  %v216 = vunpack.c.l.b16 %v72
  %v217 = vunpack.c.l.b16 %v73
  %v218 = vunpack.c.l.b16 %v74
  %v219 = vunpack.c.l.b16 %v75
  %v220 = vunpack.c.l.b16 %v76
  %v221 = vunpack.c.l.b16 %v77
  %v222 = vunpack.c.l.b16 %v78
  %v223 = vpack.c.b16 %v160, %v159
  %v224 = vpack.c.b16 %v162, %v161
  %v225 = vpack.c.b16 %v164, %v163
  %v226 = vpack.c.b16 %v166, %v165
  %v227 = vpack.c.b16 %v168, %v167
  %v228 = vpack.c.b16 %v170, %v169
  %v229 = vpack.c.b16 %v172, %v171
  %v230 = vpack.c.b16 %v174, %v173
  %v231 = vpack.c.b16 %v176, %v175
  %v232 = vpack.c.b16 %v178, %v177
  %v233 = vpack.c.b16 %v180, %v179
  %v234 = vpack.c.b16 %v182, %v181
  %v235 = vpack.c.b16 %v184, %v183
  %v236 = vpack.c.b16 %v186, %v185
  %v237 = vpack.c.b16 %v188, %v187
  %v238 = vpack.c.b16 %v190, %v189
  %v239 = vpack.c.b16 %v192, %v191
  %v240 = vpack.c.b16 %v194, %v193
  %v241 = vpack.c.b16 %v196, %v195
  %v242 = vpack.c.b16 %v198, %v197
  %v243 = vpack.c.b16 %v200, %v199
  %v244 = vpack.c.b16 %v202, %v201
  %v245 = vpack.c.b16 %v204, %v203
  %v246 = vpack.c.b16 %v206, %v205
  %v247 = vpack.c.b16 %v208, %v207
  %v248 = vpack.c.b16 %v210, %v209
  %v249 = vpack.c.b16 %v212, %v211
  %v250 = vpack.c.b16 %v214, %v213
  %v251 = vpack.c.b16 %v216, %v215
  %v252 = vpack.c.b16 %v218, %v217
  %v253 = vpack.c.b16 %v220, %v219
  %v254 = vpack.c.b16 %v222, %v221
  %v303 = vunpack.c.l.b16 %v79
  %v304 = vunpack.c.l.b16 %v80
  %v305 = vunpack.c.l.b16 %v81
  %v306 = vunpack.c.l.b16 %v82
  %v307 = vunpack.c.l.b16 %v83
  %v308 = vunpack.c.l.b16 %v84
  %v309 = vunpack.c.l.b16 %v85
  %v310 = vunpack.c.l.b16 %v86
  %v311 = vunpack.c.l.b16 %v87
  %v312 = vunpack.c.l.b16 %v88
  %v313 = vunpack.c.l.b16 %v89
  %v314 = vunpack.c.l.b16 %v90
  %v315 = vunpack.c.l.b16 %v91
  %v316 = vunpack.c.l.b16 %v92
  %v317 = vunpack.c.l.b16 %v93
  %v318 = vunpack.c.l.b16 %v94
  %v319 = vpack.c.b16 %v304, %v303
  %v320 = vpack.c.b16 %v306, %v305
  %v321 = vpack.c.b16 %v308, %v307
  %v322 = vpack.c.b16 %v310, %v309
  %v323 = vpack.c.b16 %v312, %v311
  %v324 = vpack.c.b16 %v314, %v313
  %v325 = vpack.c.b16 %v316, %v315
  %v326 = vpack.c.b16 %v318, %v317
  %335 = vmatprep.subr.bf16.mxu0 0
  %336 = vmatpush1.bf16.msra.mxu0 %v319
  %337 = vmatprep.subr.bf16.mxu0 0
  %338 = vmatpush1.bf16.msra.mxu0 %v320
  %339 = vmatprep.subr.bf16.mxu0 0
  %340 = vmatpush1.bf16.msra.mxu0 %v321
  %341 = vmatprep.subr.bf16.mxu0 0
  %342 = vmatpush1.bf16.msra.mxu0 %v322
  %343 = vmatprep.subr.bf16.mxu0 0
  %344 = vmatpush1.bf16.msra.mxu0 %v323
  %345 = vmatprep.subr.bf16.mxu0 0
  %346 = vmatpush1.bf16.msra.mxu0 %v324
  %347 = vmatprep.subr.bf16.mxu0 0
  %348 = vmatpush1.bf16.msra.mxu0 %v325
  %349 = vmatprep.subr.bf16.mxu0 0
  %350 = vmatpush1.bf16.msra.mxu0 %v326
  %351 = vmatprep.subr.bf16.mxu0 0
  %352 = vmatpush1.bf16.msra.mxu0 0
  %353 = vmatprep.subr.bf16.mxu0 0
  %354 = vmatpush1.bf16.msra.mxu0 0
  %355 = vmatprep.subr.bf16.mxu0 0
  %356 = vmatpush1.bf16.msra.mxu0 0
  %357 = vmatprep.subr.bf16.mxu0 0
  %358 = vmatpush1.bf16.msra.mxu0 0
  %359 = vmatprep.subr.bf16.mxu0 0
  %360 = vmatpush1.bf16.msra.mxu0 0
  %361 = vmatprep.subr.bf16.mxu0 0
  %362 = vmatpush1.bf16.msra.mxu0 0
  %363 = vmatprep.subr.bf16.mxu0 0
  %364 = vmatpush1.bf16.msra.mxu0 0
  %365 = vmatprep.subr.bf16.mxu0 0
  %366 = vmatpush1.bf16.msra.mxu0 0
  %367 = vmatprep.mubr.bf16.mxu0 0
  %368 = vmatmul.mubr.bf16.gmra.mrb[0].mxu0 %v223
  %v369 = vpop.f32.mrb[0].mxu0
  %v370 = vadd.f32 0.0, %v369
  %v371 = vpop.f32.mrb[0].mxu0
  %v372 = vpop.f32.mrb[0].mxu0
  %v373 = vadd.f32 0.0, %v372
  %v374 = vpop.f32.mrb[0].mxu0
  %375 = vmatprep.mubr.bf16.mxu0 0
  %376 = vmatmul.mubr.bf16.gmra.mrb[0].mxu0 %v224
  %v377 = vpop.f32.mrb[0].mxu0
  %v378 = vadd.f32 0.0, %v377
  %v379 = vpop.f32.mrb[0].mxu0
  %v380 = vpop.f32.mrb[0].mxu0
  %v381 = vadd.f32 0.0, %v380
  %v382 = vpop.f32.mrb[0].mxu0
  %383 = vmatprep.mubr.bf16.mxu0 0
  %384 = vmatmul.mubr.bf16.gmra.mrb[0].mxu0 %v225
  %v385 = vpop.f32.mrb[0].mxu0
  %v386 = vadd.f32 0.0, %v385
  %v387 = vpop.f32.mrb[0].mxu0
  %v388 = vpop.f32.mrb[0].mxu0
  %v389 = vadd.f32 0.0, %v388
  %v390 = vpop.f32.mrb[0].mxu0
  %391 = vmatprep.mubr.bf16.mxu0 0
  %392 = vmatmul.mubr.bf16.gmra.mrb[0].mxu0 %v226
  %v393 = vpop.f32.mrb[0].mxu0
  %v394 = vadd.f32 0.0, %v393
  %v395 = vpop.f32.mrb[0].mxu0
  %v396 = vpop.f32.mrb[0].mxu0
  %v397 = vadd.f32 0.0, %v396
  %v398 = vpop.f32.mrb[0].mxu0
  %399 = vmatprep.mubr.bf16.mxu0 0
  %400 = vmatmul.mubr.bf16.gmra.mrb[0].mxu0 %v227
  %v401 = vpop.f32.mrb[0].mxu0
  %v402 = vadd.f32 0.0, %v401
  %v403 = vpop.f32.mrb[0].mxu0
  %v404 = vpop.f32.mrb[0].mxu0
  %v405 = vadd.f32 0.0, %v404
  %v406 = vpop.f32.mrb[0].mxu0
  %407 = vmatprep.mubr.bf16.mxu0 0
  %408 = vmatmul.mubr.bf16.gmra.mrb[0].mxu0 %v228
  %v409 = vpop.f32.mrb[0].mxu0
  %v410 = vadd.f32 0.0, %v409
  %v411 = vpop.f32.mrb[0].mxu0
  %v412 = vpop.f32.mrb[0].mxu0
  %v413 = vadd.f32 0.0, %v412
  %v414 = vpop.f32.mrb[0].mxu0
  %415 = vmatprep.mubr.bf16.mxu0 0
  %416 = vmatmul.mubr.bf16.gmra.mrb[0].mxu0 %v229
  %v417 = vpop.f32.mrb[0].mxu0
  %v418 = vadd.f32 0.0, %v417
  %v419 = vpop.f32.mrb[0].mxu0
  %v420 = vpop.f32.mrb[0].mxu0
  %v421 = vadd.f32 0.0, %v420
  %v422 = vpop.f32.mrb[0].mxu0
  %423 = vmatprep.mubr.bf16.mxu0 0
  %424 = vmatmul.mubr.bf16.gmra.mrb[0].mxu0 %v230
  %v425 = vpop.f32.mrb[0].mxu0
  %v426 = vadd.f32 0.0, %v425
  %v427 = vpop.f32.mrb[0].mxu0
  %v428 = vpop.f32.mrb[0].mxu0
  %v429 = vadd.f32 0.0, %v428
  %v430 = vpop.f32.mrb[0].mxu0
  %431 = vmatprep.mubr.bf16.mxu0 0
  %432 = vmatmul.mubr.bf16.gmra.mrb[0].mxu0 %v231
  %v433 = vpop.f32.mrb[0].mxu0
  %v434 = vadd.f32 0.0, %v433
  %v435 = vpop.f32.mrb[0].mxu0
  %v436 = vpop.f32.mrb[0].mxu0
  %v437 = vadd.f32 0.0, %v436
  %v438 = vpop.f32.mrb[0].mxu0
  %439 = vmatprep.mubr.bf16.mxu0 0
  %440 = vmatmul.mubr.bf16.gmra.mrb[0].mxu0 %v232
  %v441 = vpop.f32.mrb[0].mxu0
  %v442 = vadd.f32 0.0, %v441
  %v443 = vpop.f32.mrb[0].mxu0
  %v444 = vpop.f32.mrb[0].mxu0
  %v445 = vadd.f32 0.0, %v444
  %v446 = vpop.f32.mrb[0].mxu0
  %447 = vmatprep.mubr.bf16.mxu0 0
  %448 = vmatmul.mubr.bf16.gmra.mrb[0].mxu0 %v233
  %v449 = vpop.f32.mrb[0].mxu0
  %v450 = vadd.f32 0.0, %v449
  %v451 = vpop.f32.mrb[0].mxu0
  %v452 = vpop.f32.mrb[0].mxu0
  %v453 = vadd.f32 0.0, %v452
  %v454 = vpop.f32.mrb[0].mxu0
  %455 = vmatprep.mubr.bf16.mxu0 0
  %456 = vmatmul.mubr.bf16.gmra.mrb[0].mxu0 %v234
  %v457 = vpop.f32.mrb[0].mxu0
  %v458 = vadd.f32 0.0, %v457
  %v459 = vpop.f32.mrb[0].mxu0
  %v460 = vpop.f32.mrb[0].mxu0
  %v461 = vadd.f32 0.0, %v460
  %v462 = vpop.f32.mrb[0].mxu0
  %463 = vmatprep.mubr.bf16.mxu0 0
  %464 = vmatmul.mubr.bf16.gmra.mrb[0].mxu0 %v235
  %v465 = vpop.f32.mrb[0].mxu0
  %v466 = vadd.f32 0.0, %v465
  %v467 = vpop.f32.mrb[0].mxu0
  %v468 = vpop.f32.mrb[0].mxu0
  %v469 = vadd.f32 0.0, %v468
  %v470 = vpop.f32.mrb[0].mxu0
  %471 = vmatprep.mubr.bf16.mxu0 0
  %472 = vmatmul.mubr.bf16.gmra.mrb[0].mxu0 %v236
  %v473 = vpop.f32.mrb[0].mxu0
  %v474 = vadd.f32 0.0, %v473
  %v475 = vpop.f32.mrb[0].mxu0
  %v476 = vpop.f32.mrb[0].mxu0
  %v477 = vadd.f32 0.0, %v476
  %v478 = vpop.f32.mrb[0].mxu0
  %479 = vmatprep.mubr.bf16.mxu0 0
  %480 = vmatmul.mubr.bf16.gmra.mrb[0].mxu0 %v237
  %v481 = vpop.f32.mrb[0].mxu0
  %v482 = vadd.f32 0.0, %v481
  %v483 = vpop.f32.mrb[0].mxu0
  %v484 = vpop.f32.mrb[0].mxu0
  %v485 = vadd.f32 0.0, %v484
  %v486 = vpop.f32.mrb[0].mxu0
  %487 = vmatprep.mubr.bf16.mxu0 0
  %488 = vmatmul.mubr.bf16.gmra.mrb[0].mxu0 %v238
  %v489 = vpop.f32.mrb[0].mxu0
  %v490 = vadd.f32 0.0, %v489
  %v491 = vpop.f32.mrb[0].mxu0
  %v492 = vpop.f32.mrb[0].mxu0
  %v493 = vadd.f32 0.0, %v492
  %v494 = vpop.f32.mrb[0].mxu0
  %495 = vmatprep.mubr.bf16.mxu0 0
  %496 = vmatmul.mubr.bf16.gmra.mrb[0].mxu0 %v239
  %v497 = vpop.f32.mrb[0].mxu0
  %v498 = vadd.f32 0.0, %v497
  %v499 = vpop.f32.mrb[0].mxu0
  %v500 = vpop.f32.mrb[0].mxu0
  %v501 = vadd.f32 0.0, %v500
  %v502 = vpop.f32.mrb[0].mxu0
  %503 = vmatprep.mubr.bf16.mxu0 0
  %504 = vmatmul.mubr.bf16.gmra.mrb[0].mxu0 %v240
  %v505 = vpop.f32.mrb[0].mxu0
  %v506 = vadd.f32 0.0, %v505
  %v507 = vpop.f32.mrb[0].mxu0
  %v508 = vpop.f32.mrb[0].mxu0
  %v509 = vadd.f32 0.0, %v508
  %v510 = vpop.f32.mrb[0].mxu0
  %511 = vmatprep.mubr.bf16.mxu0 0
  %512 = vmatmul.mubr.bf16.gmra.mrb[0].mxu0 %v241
  %v513 = vpop.f32.mrb[0].mxu0
  %v514 = vadd.f32 0.0, %v513
  %v515 = vpop.f32.mrb[0].mxu0
  %v516 = vpop.f32.mrb[0].mxu0
  %v517 = vadd.f32 0.0, %v516
  %v518 = vpop.f32.mrb[0].mxu0
  %519 = vmatprep.mubr.bf16.mxu0 0
  %520 = vmatmul.mubr.bf16.gmra.mrb[0].mxu0 %v242
  %v521 = vpop.f32.mrb[0].mxu0
  %v522 = vadd.f32 0.0, %v521
  %v523 = vpop.f32.mrb[0].mxu0
  %v524 = vpop.f32.mrb[0].mxu0
  %v525 = vadd.f32 0.0, %v524
  %v526 = vpop.f32.mrb[0].mxu0
  %527 = vmatprep.mubr.bf16.mxu0 0
  %528 = vmatmul.mubr.bf16.gmra.mrb[0].mxu0 %v243
  %v529 = vpop.f32.mrb[0].mxu0
  %v530 = vadd.f32 0.0, %v529
  %v531 = vpop.f32.mrb[0].mxu0
  %v532 = vpop.f32.mrb[0].mxu0
  %v533 = vadd.f32 0.0, %v532
  %v534 = vpop.f32.mrb[0].mxu0
  %535 = vmatprep.mubr.bf16.mxu0 0
  %536 = vmatmul.mubr.bf16.gmra.mrb[0].mxu0 %v244
  %v537 = vpop.f32.mrb[0].mxu0
  %v538 = vadd.f32 0.0, %v537
  %v539 = vpop.f32.mrb[0].mxu0
  %v540 = vpop.f32.mrb[0].mxu0
  %v541 = vadd.f32 0.0, %v540
  %v542 = vpop.f32.mrb[0].mxu0
  %543 = vmatprep.mubr.bf16.mxu0 0
  %544 = vmatmul.mubr.bf16.gmra.mrb[0].mxu0 %v245
  %v545 = vpop.f32.mrb[0].mxu0
  %v546 = vadd.f32 0.0, %v545
  %v547 = vpop.f32.mrb[0].mxu0
  %v548 = vpop.f32.mrb[0].mxu0
  %v549 = vadd.f32 0.0, %v548
  %v550 = vpop.f32.mrb[0].mxu0
  %551 = vmatprep.mubr.bf16.mxu0 0
  %552 = vmatmul.mubr.bf16.gmra.mrb[0].mxu0 %v246
  %v553 = vpop.f32.mrb[0].mxu0
  %v554 = vadd.f32 0.0, %v553
  %v555 = vpop.f32.mrb[0].mxu0
  %v556 = vpop.f32.mrb[0].mxu0
  %v557 = vadd.f32 0.0, %v556
  %v558 = vpop.f32.mrb[0].mxu0
  %559 = vmatprep.mubr.bf16.mxu0 0
  %560 = vmatmul.mubr.bf16.gmra.mrb[0].mxu0 %v247
  %v561 = vpop.f32.mrb[0].mxu0
  %v562 = vadd.f32 0.0, %v561
  %v563 = vpop.f32.mrb[0].mxu0
  %v564 = vpop.f32.mrb[0].mxu0
  %v565 = vadd.f32 0.0, %v564
  %v566 = vpop.f32.mrb[0].mxu0
  %567 = vmatprep.mubr.bf16.mxu0 0
  %568 = vmatmul.mubr.bf16.gmra.mrb[0].mxu0 %v248
  %v569 = vpop.f32.mrb[0].mxu0
  %v570 = vadd.f32 0.0, %v569
  %v571 = vpop.f32.mrb[0].mxu0
  %v572 = vpop.f32.mrb[0].mxu0
  %v573 = vadd.f32 0.0, %v572
  %v574 = vpop.f32.mrb[0].mxu0
  %575 = vmatprep.mubr.bf16.mxu0 0
  %576 = vmatmul.mubr.bf16.gmra.mrb[0].mxu0 %v249
  %v577 = vpop.f32.mrb[0].mxu0
  %v578 = vadd.f32 0.0, %v577
  %v579 = vpop.f32.mrb[0].mxu0
  %v580 = vpop.f32.mrb[0].mxu0
  %v581 = vadd.f32 0.0, %v580
  %v582 = vpop.f32.mrb[0].mxu0
  %583 = vmatprep.mubr.bf16.mxu0 0
  %584 = vmatmul.mubr.bf16.gmra.mrb[0].mxu0 %v250
  %v585 = vpop.f32.mrb[0].mxu0
  %v586 = vadd.f32 0.0, %v585
  %v587 = vpop.f32.mrb[0].mxu0
  %v588 = vpop.f32.mrb[0].mxu0
  %v589 = vadd.f32 0.0, %v588
  %v590 = vpop.f32.mrb[0].mxu0
  %591 = vmatprep.mubr.bf16.mxu0 0
  %592 = vmatmul.mubr.bf16.gmra.mrb[0].mxu0 %v251
  %v593 = vpop.f32.mrb[0].mxu0
  %v594 = vadd.f32 0.0, %v593
  %v595 = vpop.f32.mrb[0].mxu0
  %v596 = vpop.f32.mrb[0].mxu0
  %v597 = vadd.f32 0.0, %v596
  %v598 = vpop.f32.mrb[0].mxu0
  %599 = vmatprep.mubr.bf16.mxu0 0
  %600 = vmatmul.mubr.bf16.gmra.mrb[0].mxu0 %v252
  %v601 = vpop.f32.mrb[0].mxu0
  %v602 = vadd.f32 0.0, %v601
  %v603 = vpop.f32.mrb[0].mxu0
  %v604 = vpop.f32.mrb[0].mxu0
  %v605 = vadd.f32 0.0, %v604
  %v606 = vpop.f32.mrb[0].mxu0
  %607 = vmatprep.mubr.bf16.mxu0 0
  %608 = vmatmul.mubr.bf16.gmra.mrb[0].mxu0 %v253
  %v609 = vpop.f32.mrb[0].mxu0
  %v610 = vadd.f32 0.0, %v609
  %v611 = vpop.f32.mrb[0].mxu0
  %v612 = vpop.f32.mrb[0].mxu0
  %v613 = vadd.f32 0.0, %v612
  %v614 = vpop.f32.mrb[0].mxu0
  %615 = vmatprep.mubr.bf16.mxu0 0
  %616 = vmatmul.mubr.bf16.gmra.mrb[0].mxu0 %v254
  %v617 = vpop.f32.mrb[0].mxu0
  %v618 = vadd.f32 0.0, %v617
  %v619 = vpop.f32.mrb[0].mxu0
  %v620 = vpop.f32.mrb[0].mxu0
  %v621 = vadd.f32 0.0, %v620
  %v622 = vpop.f32.mrb[0].mxu0
  %623 = vdwg.mxu0
  %624 = vst [vmem:[%s2] sm:$0xff] %v370
  %625 = vst [vmem:[%s2 + $0x8] sm:$0xff] %v373
  %626 = vst [vmem:[%s2 + $0x10] sm:$0xff] %v378
  %627 = vst [vmem:[%s2 + $0x18] sm:$0xff] %v381
  %628 = vst [vmem:[%s2 + $0x20] sm:$0xff] %v386
  %629 = vst [vmem:[%s2 + $0x28] sm:$0xff] %v389
  %630 = vst [vmem:[%s2 + $0x30] sm:$0xff] %v394
  %631 = vst [vmem:[%s2 + $0x38] sm:$0xff] %v397
  %632 = vst [vmem:[%s2 + $0x40] sm:$0xff] %v402
  %633 = vst [vmem:[%s2 + $0x48] sm:$0xff] %v405
  %634 = vst [vmem:[%s2 + $0x50] sm:$0xff] %v410
  %635 = vst [vmem:[%s2 + $0x58] sm:$0xff] %v413
  %636 = vst [vmem:[%s2 + $0x60] sm:$0xff] %v418
  %637 = vst [vmem:[%s2 + $0x68] sm:$0xff] %v421
  %638 = vst [vmem:[%s2 + $0x70] sm:$0xff] %v426
  %639 = vst [vmem:[%s2 + $0x78] sm:$0xff] %v429
  %640 = vst [vmem:[%s2 + $0x80] sm:$0xff] %v434
  %641 = vst [vmem:[%s2 + $0x88] sm:$0xff] %v437
  %642 = vst [vmem:[%s2 + $0x90] sm:$0xff] %v442
  %643 = vst [vmem:[%s2 + $0x98] sm:$0xff] %v445
  %644 = vst [vmem:[%s2 + $0xa0] sm:$0xff] %v450
  %645 = vst [vmem:[%s2 + $0xa8] sm:$0xff] %v453
  %646 = vst [vmem:[%s2 + $0xb0] sm:$0xff] %v458
  %647 = vst [vmem:[%s2 + $0xb8] sm:$0xff] %v461
  %648 = vst [vmem:[%s2 + $0xc0] sm:$0xff] %v466
  %649 = vst [vmem:[%s2 + $0xc8] sm:$0xff] %v469
  %650 = vst [vmem:[%s2 + $0xd0] sm:$0xff] %v474
  %651 = vst [vmem:[%s2 + $0xd8] sm:$0xff] %v477
  %652 = vst [vmem:[%s2 + $0xe0] sm:$0xff] %v482
  %653 = vst [vmem:[%s2 + $0xe8] sm:$0xff] %v485
  %654 = vst [vmem:[%s2 + $0xf0] sm:$0xff] %v490
  %655 = vst [vmem:[%s2 + $0xf8] sm:$0xff] %v493
  %656 = vst [vmem:[%s2 + $0x100] sm:$0xff] %v498
  %657 = vst [vmem:[%s2 + $0x108] sm:$0xff] %v501
  %658 = vst [vmem:[%s2 + $0x110] sm:$0xff] %v506
  %659 = vst [vmem:[%s2 + $0x118] sm:$0xff] %v509
  %660 = vst [vmem:[%s2 + $0x120] sm:$0xff] %v514
  %661 = vst [vmem:[%s2 + $0x128] sm:$0xff] %v517
  %662 = vst [vmem:[%s2 + $0x130] sm:$0xff] %v522
  %663 = vst [vmem:[%s2 + $0x138] sm:$0xff] %v525
  %664 = vst [vmem:[%s2 + $0x140] sm:$0xff] %v530
  %665 = vst [vmem:[%s2 + $0x148] sm:$0xff] %v533
  %666 = vst [vmem:[%s2 + $0x150] sm:$0xff] %v538
  %667 = vst [vmem:[%s2 + $0x158] sm:$0xff] %v541
  %668 = vst [vmem:[%s2 + $0x160] sm:$0xff] %v546
  %669 = vst [vmem:[%s2 + $0x168] sm:$0xff] %v549
  %670 = vst [vmem:[%s2 + $0x170] sm:$0xff] %v554
  %671 = vst [vmem:[%s2 + $0x178] sm:$0xff] %v557
  %672 = vst [vmem:[%s2 + $0x180] sm:$0xff] %v562
  %673 = vst [vmem:[%s2 + $0x188] sm:$0xff] %v565
  %674 = vst [vmem:[%s2 + $0x190] sm:$0xff] %v570
  %675 = vst [vmem:[%s2 + $0x198] sm:$0xff] %v573
  %676 = vst [vmem:[%s2 + $0x1a0] sm:$0xff] %v578
  %677 = vst [vmem:[%s2 + $0x1a8] sm:$0xff] %v581
  %678 = vst [vmem:[%s2 + $0x1b0] sm:$0xff] %v586
  %679 = vst [vmem:[%s2 + $0x1b8] sm:$0xff] %v589
  %680 = vst [vmem:[%s2 + $0x1c0] sm:$0xff] %v594
  %681 = vst [vmem:[%s2 + $0x1c8] sm:$0xff] %v597
  %682 = vst [vmem:[%s2 + $0x1d0] sm:$0xff] %v602
  %683 = vst [vmem:[%s2 + $0x1d8] sm:$0xff] %v605
  %684 = vst [vmem:[%s2 + $0x1e0] sm:$0xff] %v610
  %685 = vst [vmem:[%s2 + $0x1e8] sm:$0xff] %v613
  %686 = vst [vmem:[%s2 + $0x1f0] sm:$0xff] %v618
  %687 = vst [vmem:[%s2 + $0x1f8] sm:$0xff] %v621
  %p688 = scmp.eq.s32.totalorder 0, 0
  // Predicated region
  $region10: #{a_call__.4} parent=0 // pred_check
    %p689 = pneg %p688
  $region11: #{a_call__.4} parent=0 // pred_check_branch
    %691 = sbr.rel (%p689) target = $region13
  $region12: #{a_call__.4} parent=0 // pred_region
    %692 = vst [vmem:[%s3] sm:$0x1] 0.0
    %693 = vst [vmem:[%s4] sm:$0x1] 0.0
  $region13: #{a_call__.4} parent=0 // pred_fallthru
    _
  %v694 = vld [vmem:[%s3] sm:$0x1]
  %v695 = vadd.f32 %v370, %v373
  %v696 = vadd.f32 %v695, %v378
  %v697 = vadd.f32 %v696, %v381
  %v698 = vadd.f32 %v697, %v386
  %v699 = vadd.f32 %v698, %v389
  %v700 = vadd.f32 %v699, %v394
  %v701 = vadd.f32 %v700, %v397
  %v702 = vadd.f32 %v701, %v402
  %v703 = vadd.f32 %v702, %v405
  %v704 = vadd.f32 %v703, %v410
  %v705 = vadd.f32 %v704, %v413
  %v706 = vadd.f32 %v705, %v418
  %v707 = vadd.f32 %v706, %v421
  %v708 = vadd.f32 %v707, %v426
  %v709 = vadd.f32 %v708, %v429
  %v710 = vadd.f32 %v709, %v434
  %v711 = vadd.f32 %v710, %v437
  %v712 = vadd.f32 %v711, %v442
  %v713 = vadd.f32 %v712, %v445
  %v714 = vadd.f32 %v713, %v450
  %v715 = vadd.f32 %v714, %v453
  %v716 = vadd.f32 %v715, %v458
  %v717 = vadd.f32 %v716, %v461
  %v718 = vadd.f32 %v717, %v466
  %v719 = vadd.f32 %v718, %v469
  %v720 = vadd.f32 %v719, %v474
  %v721 = vadd.f32 %v720, %v477
  %v722 = vadd.f32 %v721, %v482
  %v723 = vadd.f32 %v722, %v485
  %v724 = vadd.f32 %v723, %v490
  %v725 = vadd.f32 %v724, %v493
  %v726 = vadd.f32 %v725, %v498
  %v727 = vadd.f32 %v726, %v501
  %v728 = vadd.f32 %v727, %v506
  %v729 = vadd.f32 %v728, %v509
  %v730 = vadd.f32 %v729, %v514
  %v731 = vadd.f32 %v730, %v517
  %v732 = vadd.f32 %v731, %v522
  %v733 = vadd.f32 %v732, %v525
  %v734 = vadd.f32 %v733, %v530
  %v735 = vadd.f32 %v734, %v533
  %v736 = vadd.f32 %v735, %v538
  %v737 = vadd.f32 %v736, %v541
  %v738 = vadd.f32 %v737, %v546
  %v739 = vadd.f32 %v738, %v549
  %v740 = vadd.f32 %v739, %v554
  %v741 = vadd.f32 %v740, %v557
  %v742 = vadd.f32 %v741, %v562
  %v743 = vadd.f32 %v742, %v565
  %v744 = vadd.f32 %v743, %v570
  %v745 = vadd.f32 %v744, %v573
  %v746 = vadd.f32 %v745, %v578
  %v747 = vadd.f32 %v746, %v581
  %v748 = vadd.f32 %v747, %v586
  %v749 = vadd.f32 %v748, %v589
  %v750 = vadd.f32 %v749, %v594
  %v751 = vadd.f32 %v750, %v597
  %v752 = vadd.f32 %v751, %v602
  %v753 = vadd.f32 %v752, %v605
  %v754 = vadd.f32 %v753, %v610
  %v755 = vadd.f32 %v754, %v613
  %v756 = vadd.f32 %v755, %v618
  %v757 = vadd.f32 %v756, %v621
  %v758 = vrot.slane %v757, 4
  %v759 = vadd.f32 %v757, %v758
  %v760 = vrot.slane %v759, 2
  %v761 = vadd.f32 %v759, %v760
  %v762 = vrot.slane %v761, 1
  %v763 = vadd.f32 %v761, %v762
  %v764 = vadd.f32 %v694, %v763
  %765 = vst [vmem:[%s3] sm:$0x1] %v764
  %v766 = vld [vmem:[%s4] sm:$0x1]
  %v767 = vmul.f32 %v370, %v370
  %v768 = vmul.f32 %v373, %v373
  %v769 = vmul.f32 %v378, %v378
  %v770 = vmul.f32 %v381, %v381
  %v771 = vmul.f32 %v386, %v386
  %v772 = vmul.f32 %v389, %v389
  %v773 = vmul.f32 %v394, %v394
  %v774 = vmul.f32 %v397, %v397
  %v775 = vmul.f32 %v402, %v402
  %v776 = vmul.f32 %v405, %v405
  %v777 = vmul.f32 %v410, %v410
  %v778 = vmul.f32 %v413, %v413
  %v779 = vmul.f32 %v418, %v418
  %v780 = vmul.f32 %v421, %v421
  %v781 = vmul.f32 %v426, %v426
  %v782 = vmul.f32 %v429, %v429
  %v783 = vmul.f32 %v434, %v434
  %v784 = vmul.f32 %v437, %v437
  %v785 = vmul.f32 %v442, %v442
  %v786 = vmul.f32 %v445, %v445
  %v787 = vmul.f32 %v450, %v450
  %v788 = vmul.f32 %v453, %v453
  %v789 = vmul.f32 %v458, %v458
  %v790 = vmul.f32 %v461, %v461
  %v791 = vmul.f32 %v466, %v466
  %v792 = vmul.f32 %v469, %v469
  %v793 = vmul.f32 %v474, %v474
  %v794 = vmul.f32 %v477, %v477
  %v795 = vmul.f32 %v482, %v482
  %v796 = vmul.f32 %v485, %v485
  %v797 = vmul.f32 %v490, %v490
  %v798 = vmul.f32 %v493, %v493
  %v799 = vmul.f32 %v498, %v498
  %v800 = vmul.f32 %v501, %v501
  %v801 = vmul.f32 %v506, %v506
  %v802 = vmul.f32 %v509, %v509
  %v803 = vmul.f32 %v514, %v514
  %v804 = vmul.f32 %v517, %v517
  %v805 = vmul.f32 %v522, %v522
  %v806 = vmul.f32 %v525, %v525
  %v807 = vmul.f32 %v530, %v530
  %v808 = vmul.f32 %v533, %v533
  %v809 = vmul.f32 %v538, %v538
  %v810 = vmul.f32 %v541, %v541
  %v811 = vmul.f32 %v546, %v546
  %v812 = vmul.f32 %v549, %v549
  %v813 = vmul.f32 %v554, %v554
  %v814 = vmul.f32 %v557, %v557
  %v815 = vmul.f32 %v562, %v562
  %v816 = vmul.f32 %v565, %v565
  %v817 = vmul.f32 %v570, %v570
  %v818 = vmul.f32 %v573, %v573
  %v819 = vmul.f32 %v578, %v578
  %v820 = vmul.f32 %v581, %v581
  %v821 = vmul.f32 %v586, %v586
  %v822 = vmul.f32 %v589, %v589
  %v823 = vmul.f32 %v594, %v594
  %v824 = vmul.f32 %v597, %v597
  %v825 = vmul.f32 %v602, %v602
  %v826 = vmul.f32 %v605, %v605
  %v827 = vmul.f32 %v610, %v610
  %v828 = vmul.f32 %v613, %v613
  %v829 = vmul.f32 %v618, %v618
  %v830 = vmul.f32 %v621, %v621
  %v831 = vadd.f32 %v767, %v768
  %v832 = vadd.f32 %v831, %v769
  %v833 = vadd.f32 %v832, %v770
  %v834 = vadd.f32 %v833, %v771
  %v835 = vadd.f32 %v834, %v772
  %v836 = vadd.f32 %v835, %v773
  %v837 = vadd.f32 %v836, %v774
  %v838 = vadd.f32 %v837, %v775
  %v839 = vadd.f32 %v838, %v776
  %v840 = vadd.f32 %v839, %v777
  %v841 = vadd.f32 %v840, %v778
  %v842 = vadd.f32 %v841, %v779
  %v843 = vadd.f32 %v842, %v780
  %v844 = vadd.f32 %v843, %v781
  %v845 = vadd.f32 %v844, %v782
  %v846 = vadd.f32 %v845, %v783
  %v847 = vadd.f32 %v846, %v784
  %v848 = vadd.f32 %v847, %v785
  %v849 = vadd.f32 %v848, %v786
  %v850 = vadd.f32 %v849, %v787
  %v851 = vadd.f32 %v850, %v788
  %v852 = vadd.f32 %v851, %v789
  %v853 = vadd.f32 %v852, %v790
  %v854 = vadd.f32 %v853, %v791
  %v855 = vadd.f32 %v854, %v792
  %v856 = vadd.f32 %v855, %v793
  %v857 = vadd.f32 %v856, %v794
  %v858 = vadd.f32 %v857, %v795
  %v859 = vadd.f32 %v858, %v796
  %v860 = vadd.f32 %v859, %v797
  %v861 = vadd.f32 %v860, %v798
  %v862 = vadd.f32 %v861, %v799
  %v863 = vadd.f32 %v862, %v800
  %v864 = vadd.f32 %v863, %v801
  %v865 = vadd.f32 %v864, %v802
  %v866 = vadd.f32 %v865, %v803
  %v867 = vadd.f32 %v866, %v804
  %v868 = vadd.f32 %v867, %v805
  %v869 = vadd.f32 %v868, %v806
  %v870 = vadd.f32 %v869, %v807
  %v871 = vadd.f32 %v870, %v808
  %v872 = vadd.f32 %v871, %v809
  %v873 = vadd.f32 %v872, %v810
  %v874 = vadd.f32 %v873, %v811
  %v875 = vadd.f32 %v874, %v812
  %v876 = vadd.f32 %v875, %v813
  %v877 = vadd.f32 %v876, %v814
  %v878 = vadd.f32 %v877, %v815
  %v879 = vadd.f32 %v878, %v816
  %v880 = vadd.f32 %v879, %v817
  %v881 = vadd.f32 %v880, %v818
  %v882 = vadd.f32 %v881, %v819
  %v883 = vadd.f32 %v882, %v820
  %v884 = vadd.f32 %v883, %v821
  %v885 = vadd.f32 %v884, %v822
  %v886 = vadd.f32 %v885, %v823
  %v887 = vadd.f32 %v886, %v824
  %v888 = vadd.f32 %v887, %v825
  %v889 = vadd.f32 %v888, %v826
  %v890 = vadd.f32 %v889, %v827
  %v891 = vadd.f32 %v890, %v828
  %v892 = vadd.f32 %v891, %v829
  %v893 = vadd.f32 %v892, %v830
  %v894 = vrot.slane %v893, 4
  %v895 = vadd.f32 %v893, %v894
  %v896 = vrot.slane %v895, 2
  %v897 = vadd.f32 %v895, %v896
  %v898 = vrot.slane %v897, 1
  %v899 = vadd.f32 %v897, %v898
  %v900 = vadd.f32 %v766, %v899
  %901 = vst [vmem:[%s4] sm:$0x1] %v900
  // Predicated region
  $region14: #{a_call__.4} parent=0 // pred_check
    _
  $region15: #{a_call__.4} parent=0 // pred_check_branch
    %903 = sbr.rel (0) target = $region17
  $region16: #{a_call__.4} parent=0 // pred_region
    _
  $region17: #{a_call__.4} parent=0 // pred_fallthru
    _
  // Predicated region
  $region18: #{a_call__.4} parent=0 // pred_check
    _
  $region19: #{a_call__.4} parent=0 // pred_check_branch
    %905 = sbr.rel (0) target = $region21
  $region20: #{a_call__.4} parent=0 // pred_region
    _
  $region21: #{a_call__.4} parent=0 // pred_fallthru
    _
  // Predicated region
  $region22: #{a_call__.4} parent=0 // pred_check
    _
  $region23: #{a_call__.4} parent=0 // pred_check_branch
    %907 = sbr.rel (0) target = $region25
  $region24: #{a_call__.4} parent=0 // pred_region
    _
  $region25: #{a_call__.4} parent=0 // pred_fallthru
    _
  // Predicated region
  $region26: #{a_call__.4} parent=0 // pred_check
    _
  $region27: #{a_call__.4} parent=0 // pred_check_branch
    %909 = sbr.rel (0) target = $region29
  $region28: #{a_call__.4} parent=0 // pred_region
    _
  $region29: #{a_call__.4} parent=0 // pred_fallthru
    _
  // Predicated region
  $region30: #{a_call__.4} parent=0 // pred_check
    _
  $region31: #{a_call__.4} parent=0 // pred_check_branch
    %911 = sbr.rel (0) target = $region33
  $region32: #{a_call__.4} parent=0 // pred_region
    _
  $region33: #{a_call__.4} parent=0 // pred_fallthru
    _
  // Predicated region
  $region34: #{a_call__.4} parent=0 // pred_check
    _
  $region35: #{a_call__.4} parent=0 // pred_check_branch
    %913 = sbr.rel (0) target = $region37
  $region36: #{a_call__.4} parent=0 // pred_region
    _
  $region37: #{a_call__.4} parent=0 // pred_fallthru
    _

// kernel: a_call__.5
$region0: #{a_call__.5}
  #allocation0 [shape = 'u32[]', space=smem, size = 0x4, offset = 0x4, fixed_abs, tag = 'smem constant byte address 0x4 - core index']
  #allocation1 [shape = 'u32[144,128]{1,0:T(1,128)}', space=vmem, size = 0x12000, scoped, tag = 'internal scratch']
  %s0 = inlined_call_operand.vmem [shape: f32[512,128], index: 0, kind: input, shape index: {}]
  %s1 = inlined_call_operand.vmem [shape: f32[1,128], index: 1, kind: input, shape index: {}]
  %s2 = inlined_call_operand.vmem [shape: f32[1,128], index: 2, kind: input, shape index: {}]
  %s3 = inlined_call_operand.vmem [shape: f32[512,128], index: 3, kind: output, shape index: {}]
  %s4 = sld [smem:[#allocation0]]
  $region22: #{a_call__.5} parent=0
    _
  %s6 = ssub.s32 1, %s4
  %s7 = scalar_select 0, %s6, %s4
  // Predicated region
  $region2: #{a_call__.5} parent=0 // pred_check
    _
  $region3: #{a_call__.5} parent=0 // pred_check_branch
    %9 = sbr.rel (0) target = $region5
  $region4: #{a_call__.5} parent=0 // pred_region
    _
  $region5: #{a_call__.5} parent=0 // pred_fallthru
    _
  // Predicated region
  $region6: #{a_call__.5} parent=0 // pred_check
    _
  $region7: #{a_call__.5} parent=0 // pred_check_branch
    %11 = sbr.rel (0) target = $region9
  $region8: #{a_call__.5} parent=0 // pred_region
    _
  $region9: #{a_call__.5} parent=0 // pred_fallthru
    _
  // Predicated region
  $region10: #{a_call__.5} parent=0 // pred_check
    _
  $region11: #{a_call__.5} parent=0 // pred_check_branch
    %13 = sbr.rel (0) target = $region13
  $region12: #{a_call__.5} parent=0 // pred_region
    _
  $region13: #{a_call__.5} parent=0 // pred_fallthru
    _
  %v14 = vld [vmem:[%s0] sm:$0xff]
  %v15 = vld [vmem:[%s0 + $0x8] sm:$0xff]
  %v16 = vld [vmem:[%s0 + $0x10] sm:$0xff]
  %v17 = vld [vmem:[%s0 + $0x18] sm:$0xff]
  %v18 = vld [vmem:[%s0 + $0x20] sm:$0xff]
  %v19 = vld [vmem:[%s0 + $0x28] sm:$0xff]
  %v20 = vld [vmem:[%s0 + $0x30] sm:$0xff]
  %v21 = vld [vmem:[%s0 + $0x38] sm:$0xff]
  %v22 = vld [vmem:[%s0 + $0x40] sm:$0xff]
  %v23 = vld [vmem:[%s0 + $0x48] sm:$0xff]
  %v24 = vld [vmem:[%s0 + $0x50] sm:$0xff]
  %v25 = vld [vmem:[%s0 + $0x58] sm:$0xff]
  %v26 = vld [vmem:[%s0 + $0x60] sm:$0xff]
  %v27 = vld [vmem:[%s0 + $0x68] sm:$0xff]
  %v28 = vld [vmem:[%s0 + $0x70] sm:$0xff]
  %v29 = vld [vmem:[%s0 + $0x78] sm:$0xff]
  %v30 = vld [vmem:[%s0 + $0x80] sm:$0xff]
  %v31 = vld [vmem:[%s0 + $0x88] sm:$0xff]
  %v32 = vld [vmem:[%s0 + $0x90] sm:$0xff]
  %v33 = vld [vmem:[%s0 + $0x98] sm:$0xff]
  %v34 = vld [vmem:[%s0 + $0xa0] sm:$0xff]
  %v35 = vld [vmem:[%s0 + $0xa8] sm:$0xff]
  %v36 = vld [vmem:[%s0 + $0xb0] sm:$0xff]
  %v37 = vld [vmem:[%s0 + $0xb8] sm:$0xff]
  %v38 = vld [vmem:[%s0 + $0xc0] sm:$0xff]
  %v39 = vld [vmem:[%s0 + $0xc8] sm:$0xff]
  %v40 = vld [vmem:[%s0 + $0xd0] sm:$0xff]
  %v41 = vld [vmem:[%s0 + $0xd8] sm:$0xff]
  %v42 = vld [vmem:[%s0 + $0xe0] sm:$0xff]
  %v43 = vld [vmem:[%s0 + $0xe8] sm:$0xff]
  %v44 = vld [vmem:[%s0 + $0xf0] sm:$0xff]
  %v45 = vld [vmem:[%s0 + $0xf8] sm:$0xff]
  %v46 = vld [vmem:[%s0 + $0x100] sm:$0xff]
  %v47 = vld [vmem:[%s0 + $0x108] sm:$0xff]
  %v48 = vld [vmem:[%s0 + $0x110] sm:$0xff]
  %v49 = vld [vmem:[%s0 + $0x118] sm:$0xff]
  %v50 = vld [vmem:[%s0 + $0x120] sm:$0xff]
  %v51 = vld [vmem:[%s0 + $0x128] sm:$0xff]
  %v52 = vld [vmem:[%s0 + $0x130] sm:$0xff]
  %v53 = vld [vmem:[%s0 + $0x138] sm:$0xff]
  %v54 = vld [vmem:[%s0 + $0x140] sm:$0xff]
  %v55 = vld [vmem:[%s0 + $0x148] sm:$0xff]
  %v56 = vld [vmem:[%s0 + $0x150] sm:$0xff]
  %v57 = vld [vmem:[%s0 + $0x158] sm:$0xff]
  %v58 = vld [vmem:[%s0 + $0x160] sm:$0xff]
  %v59 = vld [vmem:[%s0 + $0x168] sm:$0xff]
  %v60 = vld [vmem:[%s0 + $0x170] sm:$0xff]
  %v61 = vld [vmem:[%s0 + $0x178] sm:$0xff]
  %v62 = vld [vmem:[%s0 + $0x180] sm:$0xff]
  %v63 = vld [vmem:[%s0 + $0x188] sm:$0xff]
  %v64 = vld [vmem:[%s0 + $0x190] sm:$0xff]
  %v65 = vld [vmem:[%s0 + $0x198] sm:$0xff]
  %v66 = vld [vmem:[%s0 + $0x1a0] sm:$0xff]
  %v67 = vld [vmem:[%s0 + $0x1a8] sm:$0xff]
  %v68 = vld [vmem:[%s0 + $0x1b0] sm:$0xff]
  %v69 = vld [vmem:[%s0 + $0x1b8] sm:$0xff]
  %v70 = vld [vmem:[%s0 + $0x1c0] sm:$0xff]
  %v71 = vld [vmem:[%s0 + $0x1c8] sm:$0xff]
  %v72 = vld [vmem:[%s0 + $0x1d0] sm:$0xff]
  %v73 = vld [vmem:[%s0 + $0x1d8] sm:$0xff]
  %v74 = vld [vmem:[%s0 + $0x1e0] sm:$0xff]
  %v75 = vld [vmem:[%s0 + $0x1e8] sm:$0xff]
  %v76 = vld [vmem:[%s0 + $0x1f0] sm:$0xff]
  %v77 = vld [vmem:[%s0 + $0x1f8] sm:$0xff]
  %v78 = vld [vmem:[%s1] sm:$0x1]
  %v80 = vlaneseq
  %v81 = vshrl.u32 %v80, 7
  %v82 = vsub.s32 0, %v81
  %v83 = vrot.slane %v78, %v82
  %v85 = vmul.f32 %v14, %v83
  %v86 = vmul.f32 %v15, %v83
  %v87 = vmul.f32 %v16, %v83
  %v88 = vmul.f32 %v17, %v83
  %v89 = vmul.f32 %v18, %v83
  %v90 = vmul.f32 %v19, %v83
  %v91 = vmul.f32 %v20, %v83
  %v92 = vmul.f32 %v21, %v83
  %v93 = vmul.f32 %v22, %v83
  %v94 = vmul.f32 %v23, %v83
  %v95 = vmul.f32 %v24, %v83
  %v96 = vmul.f32 %v25, %v83
  %v97 = vmul.f32 %v26, %v83
  %v98 = vmul.f32 %v27, %v83
  %v99 = vmul.f32 %v28, %v83
  %v100 = vmul.f32 %v29, %v83
  %v101 = vmul.f32 %v30, %v83
  %v102 = vmul.f32 %v31, %v83
  %v103 = vmul.f32 %v32, %v83
  %v104 = vmul.f32 %v33, %v83
  %v105 = vmul.f32 %v34, %v83
  %v106 = vmul.f32 %v35, %v83
  %v107 = vmul.f32 %v36, %v83
  %v108 = vmul.f32 %v37, %v83
  %v109 = vmul.f32 %v38, %v83
  %v110 = vmul.f32 %v39, %v83
  %v111 = vmul.f32 %v40, %v83
  %v112 = vmul.f32 %v41, %v83
  %v113 = vmul.f32 %v42, %v83
  %v114 = vmul.f32 %v43, %v83
  %v115 = vmul.f32 %v44, %v83
  %v116 = vmul.f32 %v45, %v83
  %v117 = vmul.f32 %v46, %v83
  %v118 = vmul.f32 %v47, %v83
  %v119 = vmul.f32 %v48, %v83
  %v120 = vmul.f32 %v49, %v83
  %v121 = vmul.f32 %v50, %v83
  %v122 = vmul.f32 %v51, %v83
  %v123 = vmul.f32 %v52, %v83
  %v124 = vmul.f32 %v53, %v83
  %v125 = vmul.f32 %v54, %v83
  %v126 = vmul.f32 %v55, %v83
  %v127 = vmul.f32 %v56, %v83
  %v128 = vmul.f32 %v57, %v83
  %v129 = vmul.f32 %v58, %v83
  %v130 = vmul.f32 %v59, %v83
  %v131 = vmul.f32 %v60, %v83
  %v132 = vmul.f32 %v61, %v83
  %v133 = vmul.f32 %v62, %v83
  %v134 = vmul.f32 %v63, %v83
  %v135 = vmul.f32 %v64, %v83
  %v136 = vmul.f32 %v65, %v83
  %v137 = vmul.f32 %v66, %v83
  %v138 = vmul.f32 %v67, %v83
  %v139 = vmul.f32 %v68, %v83
  %v140 = vmul.f32 %v69, %v83
  %v141 = vmul.f32 %v70, %v83
  %v142 = vmul.f32 %v71, %v83
  %v143 = vmul.f32 %v72, %v83
  %v144 = vmul.f32 %v73, %v83
  %v145 = vmul.f32 %v74, %v83
  %v146 = vmul.f32 %v75, %v83
  %v147 = vmul.f32 %v76, %v83
  %v148 = vmul.f32 %v77, %v83
  %v149 = vld [vmem:[%s2] sm:$0x1]
  %v151 = vlaneseq
  %v152 = vshrl.u32 %v151, 7
  %v153 = vsub.s32 0, %v152
  %v154 = vrot.slane %v149, %v153
  %v156 = vadd.f32 %v85, %v154
  %v157 = vadd.f32 %v86, %v154
  %v158 = vadd.f32 %v87, %v154
  %v159 = vadd.f32 %v88, %v154
  %v160 = vadd.f32 %v89, %v154
  %v161 = vadd.f32 %v90, %v154
  %v162 = vadd.f32 %v91, %v154
  %v163 = vadd.f32 %v92, %v154
  %v164 = vadd.f32 %v93, %v154
  %v165 = vadd.f32 %v94, %v154
  %v166 = vadd.f32 %v95, %v154
  %v167 = vadd.f32 %v96, %v154
  %v168 = vadd.f32 %v97, %v154
  %v169 = vadd.f32 %v98, %v154
  %v170 = vadd.f32 %v99, %v154
  %v171 = vadd.f32 %v100, %v154
  %v172 = vadd.f32 %v101, %v154
  %v173 = vadd.f32 %v102, %v154
  %v174 = vadd.f32 %v103, %v154
  %v175 = vadd.f32 %v104, %v154
  %v176 = vadd.f32 %v105, %v154
  %v177 = vadd.f32 %v106, %v154
  %v178 = vadd.f32 %v107, %v154
  %v179 = vadd.f32 %v108, %v154
  %v180 = vadd.f32 %v109, %v154
  %v181 = vadd.f32 %v110, %v154
  %v182 = vadd.f32 %v111, %v154
  %v183 = vadd.f32 %v112, %v154
  %v184 = vadd.f32 %v113, %v154
  %v185 = vadd.f32 %v114, %v154
  %v186 = vadd.f32 %v115, %v154
  %v187 = vadd.f32 %v116, %v154
  %v188 = vadd.f32 %v117, %v154
  %v189 = vadd.f32 %v118, %v154
  %v190 = vadd.f32 %v119, %v154
  %v191 = vadd.f32 %v120, %v154
  %v192 = vadd.f32 %v121, %v154
  %v193 = vadd.f32 %v122, %v154
  %v194 = vadd.f32 %v123, %v154
  %v195 = vadd.f32 %v124, %v154
  %v196 = vadd.f32 %v125, %v154
  %v197 = vadd.f32 %v126, %v154
  %v198 = vadd.f32 %v127, %v154
  %v199 = vadd.f32 %v128, %v154
  %v200 = vadd.f32 %v129, %v154
  %v201 = vadd.f32 %v130, %v154
  %v202 = vadd.f32 %v131, %v154
  %v203 = vadd.f32 %v132, %v154
  %v204 = vadd.f32 %v133, %v154
  %v205 = vadd.f32 %v134, %v154
  %v206 = vadd.f32 %v135, %v154
  %v207 = vadd.f32 %v136, %v154
  %v208 = vadd.f32 %v137, %v154
  %v209 = vadd.f32 %v138, %v154
  %v210 = vadd.f32 %v139, %v154
  %v211 = vadd.f32 %v140, %v154
  %v212 = vadd.f32 %v141, %v154
  %v213 = vadd.f32 %v142, %v154
  %v214 = vadd.f32 %v143, %v154
  %v215 = vadd.f32 %v144, %v154
  %v216 = vadd.f32 %v145, %v154
  %v217 = vadd.f32 %v146, %v154
  %v218 = vadd.f32 %v147, %v154
  %v219 = vadd.f32 %v148, %v154
  %v220 = vmax.f32 %v156, 0.0
  %v221 = vmax.f32 %v157, 0.0
  %v222 = vmax.f32 %v158, 0.0
  %v223 = vmax.f32 %v159, 0.0
  %v224 = vmax.f32 %v160, 0.0
  %v225 = vmax.f32 %v161, 0.0
  %v226 = vmax.f32 %v162, 0.0
  %v227 = vmax.f32 %v163, 0.0
  %v228 = vmax.f32 %v164, 0.0
  %v229 = vmax.f32 %v165, 0.0
  %v230 = vmax.f32 %v166, 0.0
  %v231 = vmax.f32 %v167, 0.0
  %v232 = vmax.f32 %v168, 0.0
  %v233 = vmax.f32 %v169, 0.0
  %v234 = vmax.f32 %v170, 0.0
  %v235 = vmax.f32 %v171, 0.0
  %v236 = vmax.f32 %v172, 0.0
  %v237 = vmax.f32 %v173, 0.0
  %v238 = vmax.f32 %v174, 0.0
  %v239 = vmax.f32 %v175, 0.0
  %v240 = vmax.f32 %v176, 0.0
  %v241 = vmax.f32 %v177, 0.0
  %v242 = vmax.f32 %v178, 0.0
  %v243 = vmax.f32 %v179, 0.0
  %v244 = vmax.f32 %v180, 0.0
  %v245 = vmax.f32 %v181, 0.0
  %v246 = vmax.f32 %v182, 0.0
  %v247 = vmax.f32 %v183, 0.0
  %v248 = vmax.f32 %v184, 0.0
  %v249 = vmax.f32 %v185, 0.0
  %v250 = vmax.f32 %v186, 0.0
  %v251 = vmax.f32 %v187, 0.0
  %v252 = vmax.f32 %v188, 0.0
  %v253 = vmax.f32 %v189, 0.0
  %v254 = vmax.f32 %v190, 0.0
  %v255 = vmax.f32 %v191, 0.0
  %v256 = vmax.f32 %v192, 0.0
  %v257 = vmax.f32 %v193, 0.0
  %v258 = vmax.f32 %v194, 0.0
  %v259 = vmax.f32 %v195, 0.0
  %v260 = vmax.f32 %v196, 0.0
  %v261 = vmax.f32 %v197, 0.0
  %v262 = vmax.f32 %v198, 0.0
  %v263 = vmax.f32 %v199, 0.0
  %v264 = vmax.f32 %v200, 0.0
  %v265 = vmax.f32 %v201, 0.0
  %v266 = vmax.f32 %v202, 0.0
  %v267 = vmax.f32 %v203, 0.0
  %v268 = vmax.f32 %v204, 0.0
  %v269 = vmax.f32 %v205, 0.0
  %v270 = vmax.f32 %v206, 0.0
  %v271 = vmax.f32 %v207, 0.0
  %v272 = vmax.f32 %v208, 0.0
  %v273 = vmax.f32 %v209, 0.0
  %v274 = vmax.f32 %v210, 0.0
  %v275 = vmax.f32 %v211, 0.0
  %v276 = vmax.f32 %v212, 0.0
  %v277 = vmax.f32 %v213, 0.0
  %v278 = vmax.f32 %v214, 0.0
  %v279 = vmax.f32 %v215, 0.0
  %v280 = vmax.f32 %v216, 0.0
  %v281 = vmax.f32 %v217, 0.0
  %v282 = vmax.f32 %v218, 0.0
  %v283 = vmax.f32 %v219, 0.0
  %284 = vst [vmem:[%s3] sm:$0xff] %v220
  %285 = vst [vmem:[%s3 + $0x8] sm:$0xff] %v221
  %286 = vst [vmem:[%s3 + $0x10] sm:$0xff] %v222
  %287 = vst [vmem:[%s3 + $0x18] sm:$0xff] %v223
  %288 = vst [vmem:[%s3 + $0x20] sm:$0xff] %v224
  %289 = vst [vmem:[%s3 + $0x28] sm:$0xff] %v225
  %290 = vst [vmem:[%s3 + $0x30] sm:$0xff] %v226
  %291 = vst [vmem:[%s3 + $0x38] sm:$0xff] %v227
  %292 = vst [vmem:[%s3 + $0x40] sm:$0xff] %v228
  %293 = vst [vmem:[%s3 + $0x48] sm:$0xff] %v229
  %294 = vst [vmem:[%s3 + $0x50] sm:$0xff] %v230
  %295 = vst [vmem:[%s3 + $0x58] sm:$0xff] %v231
  %296 = vst [vmem:[%s3 + $0x60] sm:$0xff] %v232
  %297 = vst [vmem:[%s3 + $0x68] sm:$0xff] %v233
  %298 = vst [vmem:[%s3 + $0x70] sm:$0xff] %v234
  %299 = vst [vmem:[%s3 + $0x78] sm:$0xff] %v235
  %300 = vst [vmem:[%s3 + $0x80] sm:$0xff] %v236
  %301 = vst [vmem:[%s3 + $0x88] sm:$0xff] %v237
  %302 = vst [vmem:[%s3 + $0x90] sm:$0xff] %v238
  %303 = vst [vmem:[%s3 + $0x98] sm:$0xff] %v239
  %304 = vst [vmem:[%s3 + $0xa0] sm:$0xff] %v240
  %305 = vst [vmem:[%s3 + $0xa8] sm:$0xff] %v241
  %306 = vst [vmem:[%s3 + $0xb0] sm:$0xff] %v242
  %307 = vst [vmem:[%s3 + $0xb8] sm:$0xff] %v243
  %308 = vst [vmem:[%s3 + $0xc0] sm:$0xff] %v244
  %309 = vst [vmem:[%s3 + $0xc8] sm:$0xff] %v245
  %310 = vst [vmem:[%s3 + $0xd0] sm:$0xff] %v246
  %311 = vst [vmem:[%s3 + $0xd8] sm:$0xff] %v247
  %312 = vst [vmem:[%s3 + $0xe0] sm:$0xff] %v248
  %313 = vst [vmem:[%s3 + $0xe8] sm:$0xff] %v249
  %314 = vst [vmem:[%s3 + $0xf0] sm:$0xff] %v250
  %315 = vst [vmem:[%s3 + $0xf8] sm:$0xff] %v251
  %316 = vst [vmem:[%s3 + $0x100] sm:$0xff] %v252
  %317 = vst [vmem:[%s3 + $0x108] sm:$0xff] %v253
  %318 = vst [vmem:[%s3 + $0x110] sm:$0xff] %v254
  %319 = vst [vmem:[%s3 + $0x118] sm:$0xff] %v255
  %320 = vst [vmem:[%s3 + $0x120] sm:$0xff] %v256
  %321 = vst [vmem:[%s3 + $0x128] sm:$0xff] %v257
  %322 = vst [vmem:[%s3 + $0x130] sm:$0xff] %v258
  %323 = vst [vmem:[%s3 + $0x138] sm:$0xff] %v259
  %324 = vst [vmem:[%s3 + $0x140] sm:$0xff] %v260
  %325 = vst [vmem:[%s3 + $0x148] sm:$0xff] %v261
  %326 = vst [vmem:[%s3 + $0x150] sm:$0xff] %v262
  %327 = vst [vmem:[%s3 + $0x158] sm:$0xff] %v263
  %328 = vst [vmem:[%s3 + $0x160] sm:$0xff] %v264
  %329 = vst [vmem:[%s3 + $0x168] sm:$0xff] %v265
  %330 = vst [vmem:[%s3 + $0x170] sm:$0xff] %v266
  %331 = vst [vmem:[%s3 + $0x178] sm:$0xff] %v267
  %332 = vst [vmem:[%s3 + $0x180] sm:$0xff] %v268
  %333 = vst [vmem:[%s3 + $0x188] sm:$0xff] %v269
  %334 = vst [vmem:[%s3 + $0x190] sm:$0xff] %v270
  %335 = vst [vmem:[%s3 + $0x198] sm:$0xff] %v271
  %336 = vst [vmem:[%s3 + $0x1a0] sm:$0xff] %v272
  %337 = vst [vmem:[%s3 + $0x1a8] sm:$0xff] %v273
  %338 = vst [vmem:[%s3 + $0x1b0] sm:$0xff] %v274
  %339 = vst [vmem:[%s3 + $0x1b8] sm:$0xff] %v275
  %340 = vst [vmem:[%s3 + $0x1c0] sm:$0xff] %v276
  %341 = vst [vmem:[%s3 + $0x1c8] sm:$0xff] %v277
  %342 = vst [vmem:[%s3 + $0x1d0] sm:$0xff] %v278
  %343 = vst [vmem:[%s3 + $0x1d8] sm:$0xff] %v279
  %344 = vst [vmem:[%s3 + $0x1e0] sm:$0xff] %v280
  %345 = vst [vmem:[%s3 + $0x1e8] sm:$0xff] %v281
  %346 = vst [vmem:[%s3 + $0x1f0] sm:$0xff] %v282
  %347 = vst [vmem:[%s3 + $0x1f8] sm:$0xff] %v283
  // Predicated region
  $region14: #{a_call__.5} parent=0 // pred_check
    _
  $region15: #{a_call__.5} parent=0 // pred_check_branch
    %349 = sbr.rel (0) target = $region17
  $region16: #{a_call__.5} parent=0 // pred_region
    _
  $region17: #{a_call__.5} parent=0 // pred_fallthru
    _
  // Predicated region
  $region18: #{a_call__.5} parent=0 // pred_check
    _
  $region19: #{a_call__.5} parent=0 // pred_check_branch
    %351 = sbr.rel (0) target = $region21
  $region20: #{a_call__.5} parent=0 // pred_region
    _
  $region21: #{a_call__.5} parent=0 // pred_fallthru
    _

// kernel: a_call__.6
$region0: #{a_call__.6}
  #allocation0 [shape = 'u32[]', space=smem, size = 0x4, offset = 0x4, fixed_abs, tag = 'smem constant byte address 0x4 - core index']
  #allocation1 [shape = 'u32[144,128]{1,0:T(1,128)}', space=vmem, size = 0x12000, scoped, tag = 'internal scratch']
  %s0 = inlined_call_operand.vmem [shape: bf16[512,128], index: 0, kind: input, shape index: {}]
  %s1 = inlined_call_operand.vmem [shape: bf16[128,128], index: 1, kind: input, shape index: {}]
  %s2 = inlined_call_operand.vmem [shape: f32[512,128], index: 2, kind: output, shape index: {0}]
  %s3 = inlined_call_operand.vmem [shape: f32[1,128], index: 3, kind: output, shape index: {1}]
  %s4 = inlined_call_operand.vmem [shape: f32[1,128], index: 4, kind: output, shape index: {2}]
  %5 = xla_tuple %s2, %s3, %s4
  %s6 = sld [smem:[#allocation0]]
  $region61: #{a_call__.6} parent=0
    _
  %s8 = ssub.s32 1, %s6
  %s9 = scalar_select 0, %s8, %s6
  loop: start=0, step=1, limit=4
  $region2: #{a_call__.6} parent=0 // loop_pre_header
    _
  $region3: #{a_call__.6} parent=0 // loop_header
    %s11 = sphi 0, %s15
    %p12 = scmp.ge.s32.totalorder %s11, 4
    %s21 = sphi 0, %s23
    %s24 = sphi 0, %s21
    %s25 = sphi 0, %s24
    %s41 = sphi 0, %s25
    %s45 = sphi 0, %s45
    %s47 = sphi 0, %s45
    %s48 = sphi 0, %s47
    %s62 = sphi 0, %s48
    %s68 = sphi 0, %s70
    %s71 = sphi 0, %s68
    %s72 = sphi 0, %s71
    %s88 = sphi 0, %s72
    %s92 = sphi 0, %s92
    %s94 = sphi 0, %s92
    %s95 = sphi 0, %s94
    %s109 = sphi 0, %s95
    %s113 = sphi 0, %s113
    %s115 = sphi 0, %s113
    %s116 = sphi 0, %s115
    %s130 = sphi 0, %s116
  $region4: #{a_call__.6} parent=0 // loop_header_branch
    %14 = sbr.rel (%p12) target = $region8
  $region5: #{a_call__.6} parent=0 // loop_body
    %s16 = ssub.s32 %s11, 1
    %s17 = ssub.s32 %s11, 2
    %s18 = sadd.s32 %s11, 1
    %s19 = ssub.s32 %s11, %s18
    %p20 = scmp.eq.s32.totalorder %s19, 0
    %s22 = sadd.s32 %s21, 1
    %s23 = scalar_select %p20, %s21, %s22
    %p26 = pneg %p20
    %p27 = scmp.eq.s32.totalorder %s11, 1
    %p28 = por %p26, %p27
    %p29 = scmp.ne.s32.totalorder %s21, %s24
    %p30 = scmp.eq.s32.totalorder %s11, 0
    %p31 = por %p29, %p30
    %p32 = scmp.ne.s32.totalorder %s21, %s24
    %p33 = scmp.eq.s32.totalorder %s16, 1
    %p34 = por %p32, %p33
    %p35 = scmp.ne.s32.totalorder %s24, %s25
    %p36 = scmp.eq.s32.totalorder %s16, 0
    %p37 = por %p35, %p36
    %p38 = scmp.ne.s32.totalorder %s24, %s25
    %p39 = scmp.eq.s32.totalorder %s17, 1
    %p40 = por %p38, %p39
    %p42 = scmp.ne.s32.totalorder %s25, %s41
    %p43 = scmp.eq.s32.totalorder %s17, 0
    %p44 = por %p42, %p43
    %s46 = sadd.s32 %s45, 1
    %p49 = scmp.eq.s32.totalorder %s11, 1
    %p50 = scmp.ne.s32.totalorder %s45, %s47
    %p51 = scmp.eq.s32.totalorder %s11, 0
    %p52 = por %p50, %p51
    %p53 = scmp.ne.s32.totalorder %s45, %s47
    %p54 = scmp.eq.s32.totalorder %s16, 1
    %p55 = por %p53, %p54
    %p56 = scmp.ne.s32.totalorder %s47, %s48
    %p57 = scmp.eq.s32.totalorder %s16, 0
    %p58 = por %p56, %p57
    %p59 = scmp.ne.s32.totalorder %s47, %s48
    %p60 = scmp.eq.s32.totalorder %s17, 1
    %p61 = por %p59, %p60
    %p63 = scmp.ne.s32.totalorder %s48, %s62
    %p64 = scmp.eq.s32.totalorder %s17, 0
    %p65 = por %p63, %p64
    %s66 = ssub.s32 %s11, %s18
    %p67 = scmp.eq.s32.totalorder %s66, 0
    %s69 = sadd.s32 %s68, 1
    %s70 = scalar_select %p67, %s68, %s69
    %p73 = pneg %p67
    %p74 = scmp.eq.s32.totalorder %s11, 1
    %p75 = por %p73, %p74
    %p76 = scmp.ne.s32.totalorder %s68, %s71
    %p77 = scmp.eq.s32.totalorder %s11, 0
    %p78 = por %p76, %p77
    %p79 = scmp.ne.s32.totalorder %s68, %s71
    %p80 = scmp.eq.s32.totalorder %s16, 1
    %p81 = por %p79, %p80
    %p82 = scmp.ne.s32.totalorder %s71, %s72
    %p83 = scmp.eq.s32.totalorder %s16, 0
    %p84 = por %p82, %p83
    %p85 = scmp.ne.s32.totalorder %s71, %s72
    %p86 = scmp.eq.s32.totalorder %s17, 1
    %p87 = por %p85, %p86
    %p89 = scmp.ne.s32.totalorder %s72, %s88
    %p90 = scmp.eq.s32.totalorder %s17, 0
    %p91 = por %p89, %p90
    %s93 = sadd.s32 %s92, 1
    %p96 = scmp.eq.s32.totalorder %s11, 1
    %p97 = scmp.ne.s32.totalorder %s92, %s94
    %p98 = scmp.eq.s32.totalorder %s11, 0
    %p99 = por %p97, %p98
    %p100 = scmp.ne.s32.totalorder %s92, %s94
    %p101 = scmp.eq.s32.totalorder %s16, 1
    %p102 = por %p100, %p101
    %p103 = scmp.ne.s32.totalorder %s94, %s95
    %p104 = scmp.eq.s32.totalorder %s16, 0
    %p105 = por %p103, %p104
    %p106 = scmp.ne.s32.totalorder %s94, %s95
    %p107 = scmp.eq.s32.totalorder %s17, 1
    %p108 = por %p106, %p107
    %p110 = scmp.ne.s32.totalorder %s95, %s109
    %p111 = scmp.eq.s32.totalorder %s17, 0
    %p112 = por %p110, %p111
    %s114 = sadd.s32 %s113, 1
    %p117 = scmp.eq.s32.totalorder %s11, 1
    %p118 = scmp.ne.s32.totalorder %s113, %s115
    %p119 = scmp.eq.s32.totalorder %s11, 0
    %p120 = por %p118, %p119
    %p121 = scmp.ne.s32.totalorder %s113, %s115
    %p122 = scmp.eq.s32.totalorder %s16, 1
    %p123 = por %p121, %p122
    %p124 = scmp.ne.s32.totalorder %s115, %s116
    %p125 = scmp.eq.s32.totalorder %s16, 0
    %p126 = por %p124, %p125
    %p127 = scmp.ne.s32.totalorder %s115, %s116
    %p128 = scmp.eq.s32.totalorder %s17, 1
    %p129 = por %p127, %p128
    %p131 = scmp.ne.s32.totalorder %s116, %s130
    %p132 = scmp.eq.s32.totalorder %s17, 0
    %p133 = por %p131, %p132
    %p134 = scmp.le.s32.totalorder 1, %s11
    %p135 = scmp.lt.s32.totalorder %s11, 3
    %p136 = pnand %p134, %p135
    %p137 = pneg %p136
    // Predicated region
    $region9: #{a_call__.6} parent=5 // pred_check
      _
    $region10: #{a_call__.6} parent=5 // pred_check_branch
      %139 = sbr.rel (%p136) target = $region12
    $region11: #{a_call__.6} parent=5 // pred_region
      %s140 = ssub.s32 %s11, 1
      // Predicated region
      $region13: #{a_call__.6} parent=11 // pred_check
        %p141 = pneg %p58
      $region14: #{a_call__.6} parent=11 // pred_check_branch
        %143 = sbr.rel (%p141) target = $region16
      $region15: #{a_call__.6} parent=11 // pred_region
        _
      $region16: #{a_call__.6} parent=11 // pred_fallthru
        _
    $region12: #{a_call__.6} parent=5 // pred_fallthru
      _
    %p144 = scmp.lt.s32.totalorder %s11, 2
    // Predicated region
    $region17: #{a_call__.6} parent=5 // pred_check
      %p145 = pneg %p144
    $region18: #{a_call__.6} parent=5 // pred_check_branch
      %147 = sbr.rel (%p145) target = $region20
    $region19: #{a_call__.6} parent=5 // pred_region
      // Predicated region
      $region21: #{a_call__.6} parent=19 // pred_check
        %p148 = pneg %p31
      $region22: #{a_call__.6} parent=19 // pred_check_branch
        %150 = sbr.rel (%p148) target = $region24
      $region23: #{a_call__.6} parent=19 // pred_region
        %s151 = smul.u32 32, %s11
        %p152 = scmp.lt.s32.totalorder %s151, 63
        %s153 = scalar_select %p152, %s151, 63
        %s154 = smul.addr %s153, 4
        %s155 = scalar_lea.vmem %s0, %s154
        %s156 = smul.u32 32, %s11
      $region24: #{a_call__.6} parent=19 // pred_fallthru
        _
    $region20: #{a_call__.6} parent=5 // pred_fallthru
      _
    %p157 = scmp.le.s32.totalorder 1, %s11
    %p158 = scmp.lt.s32.totalorder %s11, 3
    %p159 = pnand %p157, %p158
    %p160 = pneg %p159
    // Predicated region
    $region25: #{a_call__.6} parent=5 // pred_check
      _
    $region26: #{a_call__.6} parent=5 // pred_check_branch
      %162 = sbr.rel (%p159) target = $region28
    $region27: #{a_call__.6} parent=5 // pred_region
      %s163 = ssub.s32 %s11, 1
      %s164 = smul.u32 32, %s16
      %p165 = scmp.lt.s32.totalorder %s164, 63
      %s166 = scalar_select %p165, %s164, 63
      %s167 = smul.addr %s166, 4
      %s168 = scalar_lea.vmem %s0, %s167
      %p169 = pneg %p37
      %p170 = pneg %p34
      %p171 = pneg %p58
      %p172 = pneg %p55
      %p173 = pneg %p84
      %p174 = pneg %p81
      %s175 = smul.u32 32, %s16
      %p176 = scmp.lt.s32.totalorder %s175, 63
      %s177 = scalar_select %p176, %s175, 63
      %s178 = smul.addr %s177, 8
      %s179 = scalar_lea.vmem %s2, %s178
      %p180 = pneg %p105
      %p181 = pneg %p102
      %p182 = pneg %p126
      %p183 = pneg %p123
      %s184 = smul.u32 32, %s16
      %p185 = scmp.lt.s32.totalorder %s184, 63
      %s186 = scalar_select %p185, %s184, 63
      %s187 = smul.addr %s186, 4
      %s188 = scalar_lea.vmem %s0, %s187
      %s189 = smul.u32 32, %s16
      %s190 = smul.u32 32, %s16
      %p191 = scmp.lt.s32.totalorder %s190, 63
      %s192 = scalar_select %p191, %s190, 63
      %s193 = smul.addr %s192, 8
      %s194 = scalar_lea.vmem %s2, %s193
      %s195 = smul.u32 32, %s16
      %v197 = vld [vmem:[%s188] sm:$0xf]
      %v198 = vld [vmem:[%s188 + $0x4] sm:$0xf]
      %v199 = vld [vmem:[%s188 + $0x8] sm:$0xf]
      %v200 = vld [vmem:[%s188 + $0xc] sm:$0xf]
      %v201 = vld [vmem:[%s188 + $0x10] sm:$0xf]
      %v202 = vld [vmem:[%s188 + $0x14] sm:$0xf]
      %v203 = vld [vmem:[%s188 + $0x18] sm:$0xf]
      %v204 = vld [vmem:[%s188 + $0x1c] sm:$0xf]
      %v205 = vld [vmem:[%s188 + $0x20] sm:$0xf]
      %v206 = vld [vmem:[%s188 + $0x24] sm:$0xf]
      %v207 = vld [vmem:[%s188 + $0x28] sm:$0xf]
      %v208 = vld [vmem:[%s188 + $0x2c] sm:$0xf]
      %v209 = vld [vmem:[%s188 + $0x30] sm:$0xf]
      %v210 = vld [vmem:[%s188 + $0x34] sm:$0xf]
      %v211 = vld [vmem:[%s188 + $0x38] sm:$0xf]
      %v212 = vld [vmem:[%s188 + $0x3c] sm:$0xf]
      %v213 = vld [vmem:[%s188 + $0x40] sm:$0xf]
      %v214 = vld [vmem:[%s188 + $0x44] sm:$0xf]
      %v215 = vld [vmem:[%s188 + $0x48] sm:$0xf]
      %v216 = vld [vmem:[%s188 + $0x4c] sm:$0xf]
      %v217 = vld [vmem:[%s188 + $0x50] sm:$0xf]
      %v218 = vld [vmem:[%s188 + $0x54] sm:$0xf]
      %v219 = vld [vmem:[%s188 + $0x58] sm:$0xf]
      %v220 = vld [vmem:[%s188 + $0x5c] sm:$0xf]
      %v221 = vld [vmem:[%s188 + $0x60] sm:$0xf]
      %v222 = vld [vmem:[%s188 + $0x64] sm:$0xf]
      %v223 = vld [vmem:[%s188 + $0x68] sm:$0xf]
      %v224 = vld [vmem:[%s188 + $0x6c] sm:$0xf]
      %v225 = vld [vmem:[%s188 + $0x70] sm:$0xf]
      %v226 = vld [vmem:[%s188 + $0x74] sm:$0xf]
      %v227 = vld [vmem:[%s188 + $0x78] sm:$0xf]
      %v228 = vld [vmem:[%s188 + $0x7c] sm:$0xf]
      %v229 = vld [vmem:[%s1] sm:$0xf]
      %v230 = vld [vmem:[%s1 + $0x4] sm:$0xf]
      %v231 = vld [vmem:[%s1 + $0x8] sm:$0xf]
      %v232 = vld [vmem:[%s1 + $0xc] sm:$0xf]
      %v233 = vld [vmem:[%s1 + $0x10] sm:$0xf]
      %v234 = vld [vmem:[%s1 + $0x14] sm:$0xf]
      %v235 = vld [vmem:[%s1 + $0x18] sm:$0xf]
      %v236 = vld [vmem:[%s1 + $0x1c] sm:$0xf]
      %v237 = vld [vmem:[%s1 + $0x20] sm:$0xf]
      %v238 = vld [vmem:[%s1 + $0x24] sm:$0xf]
      %v239 = vld [vmem:[%s1 + $0x28] sm:$0xf]
      %v240 = vld [vmem:[%s1 + $0x2c] sm:$0xf]
      %v241 = vld [vmem:[%s1 + $0x30] sm:$0xf]
      %v242 = vld [vmem:[%s1 + $0x34] sm:$0xf]
      %v243 = vld [vmem:[%s1 + $0x38] sm:$0xf]
      %v244 = vld [vmem:[%s1 + $0x3c] sm:$0xf]
      %v277 = vunpack.c.l.b16 %v197
      %v278 = vunpack.c.l.b16 %v198
      %v279 = vunpack.c.l.b16 %v199
      %v280 = vunpack.c.l.b16 %v200
      %v281 = vunpack.c.l.b16 %v201
      %v282 = vunpack.c.l.b16 %v202
      %v283 = vunpack.c.l.b16 %v203
      %v284 = vunpack.c.l.b16 %v204
      %v285 = vunpack.c.l.b16 %v205
      %v286 = vunpack.c.l.b16 %v206
      %v287 = vunpack.c.l.b16 %v207
      %v288 = vunpack.c.l.b16 %v208
      %v289 = vunpack.c.l.b16 %v209
      %v290 = vunpack.c.l.b16 %v210
      %v291 = vunpack.c.l.b16 %v211
      %v292 = vunpack.c.l.b16 %v212
      %v293 = vunpack.c.l.b16 %v213
      %v294 = vunpack.c.l.b16 %v214
      %v295 = vunpack.c.l.b16 %v215
      %v296 = vunpack.c.l.b16 %v216
      %v297 = vunpack.c.l.b16 %v217
      %v298 = vunpack.c.l.b16 %v218
      %v299 = vunpack.c.l.b16 %v219
      %v300 = vunpack.c.l.b16 %v220
      %v301 = vunpack.c.l.b16 %v221
      %v302 = vunpack.c.l.b16 %v222
      %v303 = vunpack.c.l.b16 %v223
      %v304 = vunpack.c.l.b16 %v224
      %v305 = vunpack.c.l.b16 %v225
      %v306 = vunpack.c.l.b16 %v226
      %v307 = vunpack.c.l.b16 %v227
      %v308 = vunpack.c.l.b16 %v228
      %v309 = vpack.c.b16 %v278, %v277
      %v310 = vpack.c.b16 %v280, %v279
      %v311 = vpack.c.b16 %v282, %v281
      %v312 = vpack.c.b16 %v284, %v283
      %v313 = vpack.c.b16 %v286, %v285
      %v314 = vpack.c.b16 %v288, %v287
      %v315 = vpack.c.b16 %v290, %v289
      %v316 = vpack.c.b16 %v292, %v291
      %v317 = vpack.c.b16 %v294, %v293
      %v318 = vpack.c.b16 %v296, %v295
      %v319 = vpack.c.b16 %v298, %v297
      %v320 = vpack.c.b16 %v300, %v299
      %v321 = vpack.c.b16 %v302, %v301
      %v322 = vpack.c.b16 %v304, %v303
      %v323 = vpack.c.b16 %v306, %v305
      %v324 = vpack.c.b16 %v308, %v307
      %v357 = vunpack.c.l.b16 %v229
      %v358 = vunpack.c.l.b16 %v230
      %v359 = vunpack.c.l.b16 %v231
      %v360 = vunpack.c.l.b16 %v232
      %v361 = vunpack.c.l.b16 %v233
      %v362 = vunpack.c.l.b16 %v234
      %v363 = vunpack.c.l.b16 %v235
      %v364 = vunpack.c.l.b16 %v236
      %v365 = vunpack.c.l.b16 %v237
      %v366 = vunpack.c.l.b16 %v238
      %v367 = vunpack.c.l.b16 %v239
      %v368 = vunpack.c.l.b16 %v240
      %v369 = vunpack.c.l.b16 %v241
      %v370 = vunpack.c.l.b16 %v242
      %v371 = vunpack.c.l.b16 %v243
      %v372 = vunpack.c.l.b16 %v244
      %v373 = vpack.c.b16 %v358, %v357
      %v374 = vpack.c.b16 %v360, %v359
      %v375 = vpack.c.b16 %v362, %v361
      %v376 = vpack.c.b16 %v364, %v363
      %v377 = vpack.c.b16 %v366, %v365
      %v378 = vpack.c.b16 %v368, %v367
      %v379 = vpack.c.b16 %v370, %v369
      %v380 = vpack.c.b16 %v372, %v371
      %389 = vmatprep.subr.bf16.mxu0 0
      %390 = vmatpush1.bf16.msra.mxu0 %v373
      %391 = vmatprep.subr.bf16.mxu0 0
      %392 = vmatpush1.bf16.msra.mxu0 %v374
      %393 = vmatprep.subr.bf16.mxu0 0
      %394 = vmatpush1.bf16.msra.mxu0 %v375
      %395 = vmatprep.subr.bf16.mxu0 0
      %396 = vmatpush1.bf16.msra.mxu0 %v376
      %397 = vmatprep.subr.bf16.mxu0 0
      %398 = vmatpush1.bf16.msra.mxu0 %v377
      %399 = vmatprep.subr.bf16.mxu0 0
      %400 = vmatpush1.bf16.msra.mxu0 %v378
      %401 = vmatprep.subr.bf16.mxu0 0
      %402 = vmatpush1.bf16.msra.mxu0 %v379
      %403 = vmatprep.subr.bf16.mxu0 0
      %404 = vmatpush1.bf16.msra.mxu0 %v380
      %405 = vmatprep.subr.bf16.mxu0 0
      %406 = vmatpush1.bf16.msra.mxu0 0
      %407 = vmatprep.subr.bf16.mxu0 0
      %408 = vmatpush1.bf16.msra.mxu0 0
      %409 = vmatprep.subr.bf16.mxu0 0
      %410 = vmatpush1.bf16.msra.mxu0 0
      %411 = vmatprep.subr.bf16.mxu0 0
      %412 = vmatpush1.bf16.msra.mxu0 0
      %413 = vmatprep.subr.bf16.mxu0 0
      %414 = vmatpush1.bf16.msra.mxu0 0
      %415 = vmatprep.subr.bf16.mxu0 0
      %416 = vmatpush1.bf16.msra.mxu0 0
      %417 = vmatprep.subr.bf16.mxu0 0
      %418 = vmatpush1.bf16.msra.mxu0 0
      %419 = vmatprep.subr.bf16.mxu0 0
      %420 = vmatpush1.bf16.msra.mxu0 0
      %421 = vmatprep.mubr.bf16.mxu0 0
      %422 = vmatmul.mubr.bf16.gmra.mrb[0].mxu0 %v309
      %v423 = vpop.f32.mrb[0].mxu0
      %v424 = vadd.f32 0.0, %v423
      %v425 = vpop.f32.mrb[0].mxu0
      %v426 = vpop.f32.mrb[0].mxu0
      %v427 = vadd.f32 0.0, %v426
      %v428 = vpop.f32.mrb[0].mxu0
      %429 = vmatprep.mubr.bf16.mxu0 0
      %430 = vmatmul.mubr.bf16.gmra.mrb[0].mxu0 %v310
      %v431 = vpop.f32.mrb[0].mxu0
      %v432 = vadd.f32 0.0, %v431
      %v433 = vpop.f32.mrb[0].mxu0
      %v434 = vpop.f32.mrb[0].mxu0
      %v435 = vadd.f32 0.0, %v434
      %v436 = vpop.f32.mrb[0].mxu0
      %437 = vmatprep.mubr.bf16.mxu0 0
      %438 = vmatmul.mubr.bf16.gmra.mrb[0].mxu0 %v311
      %v439 = vpop.f32.mrb[0].mxu0
      %v440 = vadd.f32 0.0, %v439
      %v441 = vpop.f32.mrb[0].mxu0
      %v442 = vpop.f32.mrb[0].mxu0
      %v443 = vadd.f32 0.0, %v442
      %v444 = vpop.f32.mrb[0].mxu0
      %445 = vmatprep.mubr.bf16.mxu0 0
      %446 = vmatmul.mubr.bf16.gmra.mrb[0].mxu0 %v312
      %v447 = vpop.f32.mrb[0].mxu0
      %v448 = vadd.f32 0.0, %v447
      %v449 = vpop.f32.mrb[0].mxu0
      %v450 = vpop.f32.mrb[0].mxu0
      %v451 = vadd.f32 0.0, %v450
      %v452 = vpop.f32.mrb[0].mxu0
      %453 = vmatprep.mubr.bf16.mxu0 0
      %454 = vmatmul.mubr.bf16.gmra.mrb[0].mxu0 %v313
      %v455 = vpop.f32.mrb[0].mxu0
      %v456 = vadd.f32 0.0, %v455
      %v457 = vpop.f32.mrb[0].mxu0
      %v458 = vpop.f32.mrb[0].mxu0
      %v459 = vadd.f32 0.0, %v458
      %v460 = vpop.f32.mrb[0].mxu0
      %461 = vmatprep.mubr.bf16.mxu0 0
      %462 = vmatmul.mubr.bf16.gmra.mrb[0].mxu0 %v314
      %v463 = vpop.f32.mrb[0].mxu0
      %v464 = vadd.f32 0.0, %v463
      %v465 = vpop.f32.mrb[0].mxu0
      %v466 = vpop.f32.mrb[0].mxu0
      %v467 = vadd.f32 0.0, %v466
      %v468 = vpop.f32.mrb[0].mxu0
      %469 = vmatprep.mubr.bf16.mxu0 0
      %470 = vmatmul.mubr.bf16.gmra.mrb[0].mxu0 %v315
      %v471 = vpop.f32.mrb[0].mxu0
      %v472 = vadd.f32 0.0, %v471
      %v473 = vpop.f32.mrb[0].mxu0
      %v474 = vpop.f32.mrb[0].mxu0
      %v475 = vadd.f32 0.0, %v474
      %v476 = vpop.f32.mrb[0].mxu0
      %477 = vmatprep.mubr.bf16.mxu0 0
      %478 = vmatmul.mubr.bf16.gmra.mrb[0].mxu0 %v316
      %v479 = vpop.f32.mrb[0].mxu0
      %v480 = vadd.f32 0.0, %v479
      %v481 = vpop.f32.mrb[0].mxu0
      %v482 = vpop.f32.mrb[0].mxu0
      %v483 = vadd.f32 0.0, %v482
      %v484 = vpop.f32.mrb[0].mxu0
      %485 = vmatprep.mubr.bf16.mxu0 0
      %486 = vmatmul.mubr.bf16.gmra.mrb[0].mxu0 %v317
      %v487 = vpop.f32.mrb[0].mxu0
      %v488 = vadd.f32 0.0, %v487
      %v489 = vpop.f32.mrb[0].mxu0
      %v490 = vpop.f32.mrb[0].mxu0
      %v491 = vadd.f32 0.0, %v490
      %v492 = vpop.f32.mrb[0].mxu0
      %493 = vmatprep.mubr.bf16.mxu0 0
      %494 = vmatmul.mubr.bf16.gmra.mrb[0].mxu0 %v318
      %v495 = vpop.f32.mrb[0].mxu0
      %v496 = vadd.f32 0.0, %v495
      %v497 = vpop.f32.mrb[0].mxu0
      %v498 = vpop.f32.mrb[0].mxu0
      %v499 = vadd.f32 0.0, %v498
      %v500 = vpop.f32.mrb[0].mxu0
      %501 = vmatprep.mubr.bf16.mxu0 0
      %502 = vmatmul.mubr.bf16.gmra.mrb[0].mxu0 %v319
      %v503 = vpop.f32.mrb[0].mxu0
      %v504 = vadd.f32 0.0, %v503
      %v505 = vpop.f32.mrb[0].mxu0
      %v506 = vpop.f32.mrb[0].mxu0
      %v507 = vadd.f32 0.0, %v506
      %v508 = vpop.f32.mrb[0].mxu0
      %509 = vmatprep.mubr.bf16.mxu0 0
      %510 = vmatmul.mubr.bf16.gmra.mrb[0].mxu0 %v320
      %v511 = vpop.f32.mrb[0].mxu0
      %v512 = vadd.f32 0.0, %v511
      %v513 = vpop.f32.mrb[0].mxu0
      %v514 = vpop.f32.mrb[0].mxu0
      %v515 = vadd.f32 0.0, %v514
      %v516 = vpop.f32.mrb[0].mxu0
      %517 = vmatprep.mubr.bf16.mxu0 0
      %518 = vmatmul.mubr.bf16.gmra.mrb[0].mxu0 %v321
      %v519 = vpop.f32.mrb[0].mxu0
      %v520 = vadd.f32 0.0, %v519
      %v521 = vpop.f32.mrb[0].mxu0
      %v522 = vpop.f32.mrb[0].mxu0
      %v523 = vadd.f32 0.0, %v522
      %v524 = vpop.f32.mrb[0].mxu0
      %525 = vmatprep.mubr.bf16.mxu0 0
      %526 = vmatmul.mubr.bf16.gmra.mrb[0].mxu0 %v322
      %v527 = vpop.f32.mrb[0].mxu0
      %v528 = vadd.f32 0.0, %v527
      %v529 = vpop.f32.mrb[0].mxu0
      %v530 = vpop.f32.mrb[0].mxu0
      %v531 = vadd.f32 0.0, %v530
      %v532 = vpop.f32.mrb[0].mxu0
      %533 = vmatprep.mubr.bf16.mxu0 0
      %534 = vmatmul.mubr.bf16.gmra.mrb[0].mxu0 %v323
      %v535 = vpop.f32.mrb[0].mxu0
      %v536 = vadd.f32 0.0, %v535
      %v537 = vpop.f32.mrb[0].mxu0
      %v538 = vpop.f32.mrb[0].mxu0
      %v539 = vadd.f32 0.0, %v538
      %v540 = vpop.f32.mrb[0].mxu0
      %541 = vmatprep.mubr.bf16.mxu0 0
      %542 = vmatmul.mubr.bf16.gmra.mrb[0].mxu0 %v324
      %v543 = vpop.f32.mrb[0].mxu0
      %v544 = vadd.f32 0.0, %v543
      %v545 = vpop.f32.mrb[0].mxu0
      %v546 = vpop.f32.mrb[0].mxu0
      %v547 = vadd.f32 0.0, %v546
      %v548 = vpop.f32.mrb[0].mxu0
      %549 = vdwg.mxu0
      %550 = vst [vmem:[%s194] sm:$0xff] %v424
      %551 = vst [vmem:[%s194 + $0x8] sm:$0xff] %v427
      %552 = vst [vmem:[%s194 + $0x10] sm:$0xff] %v432
      %553 = vst [vmem:[%s194 + $0x18] sm:$0xff] %v435
      %554 = vst [vmem:[%s194 + $0x20] sm:$0xff] %v440
      %555 = vst [vmem:[%s194 + $0x28] sm:$0xff] %v443
      %556 = vst [vmem:[%s194 + $0x30] sm:$0xff] %v448
      %557 = vst [vmem:[%s194 + $0x38] sm:$0xff] %v451
      %558 = vst [vmem:[%s194 + $0x40] sm:$0xff] %v456
      %559 = vst [vmem:[%s194 + $0x48] sm:$0xff] %v459
      %560 = vst [vmem:[%s194 + $0x50] sm:$0xff] %v464
      %561 = vst [vmem:[%s194 + $0x58] sm:$0xff] %v467
      %562 = vst [vmem:[%s194 + $0x60] sm:$0xff] %v472
      %563 = vst [vmem:[%s194 + $0x68] sm:$0xff] %v475
      %564 = vst [vmem:[%s194 + $0x70] sm:$0xff] %v480
      %565 = vst [vmem:[%s194 + $0x78] sm:$0xff] %v483
      %566 = vst [vmem:[%s194 + $0x80] sm:$0xff] %v488
      %567 = vst [vmem:[%s194 + $0x88] sm:$0xff] %v491
      %568 = vst [vmem:[%s194 + $0x90] sm:$0xff] %v496
      %569 = vst [vmem:[%s194 + $0x98] sm:$0xff] %v499
      %570 = vst [vmem:[%s194 + $0xa0] sm:$0xff] %v504
      %571 = vst [vmem:[%s194 + $0xa8] sm:$0xff] %v507
      %572 = vst [vmem:[%s194 + $0xb0] sm:$0xff] %v512
      %573 = vst [vmem:[%s194 + $0xb8] sm:$0xff] %v515
      %574 = vst [vmem:[%s194 + $0xc0] sm:$0xff] %v520
      %575 = vst [vmem:[%s194 + $0xc8] sm:$0xff] %v523
      %576 = vst [vmem:[%s194 + $0xd0] sm:$0xff] %v528
      %577 = vst [vmem:[%s194 + $0xd8] sm:$0xff] %v531
      %578 = vst [vmem:[%s194 + $0xe0] sm:$0xff] %v536
      %579 = vst [vmem:[%s194 + $0xe8] sm:$0xff] %v539
      %580 = vst [vmem:[%s194 + $0xf0] sm:$0xff] %v544
      %581 = vst [vmem:[%s194 + $0xf8] sm:$0xff] %v547
      %p582 = scmp.eq.s32.totalorder %s16, 0
      // Predicated region
      $region29: #{a_call__.6} parent=27 // pred_check
        %p583 = pneg %p582
      $region30: #{a_call__.6} parent=27 // pred_check_branch
        %585 = sbr.rel (%p583) target = $region32
      $region31: #{a_call__.6} parent=27 // pred_region
        %586 = vst [vmem:[%s3] sm:$0x1] 0.0
        %587 = vst [vmem:[%s4] sm:$0x1] 0.0
      $region32: #{a_call__.6} parent=27 // pred_fallthru
        _
      %v588 = vld [vmem:[%s3] sm:$0x1]
      %v589 = vadd.f32 %v424, %v427
      %v590 = vadd.f32 %v589, %v432
      %v591 = vadd.f32 %v590, %v435
      %v592 = vadd.f32 %v591, %v440
      %v593 = vadd.f32 %v592, %v443
      %v594 = vadd.f32 %v593, %v448
      %v595 = vadd.f32 %v594, %v451
      %v596 = vadd.f32 %v595, %v456
      %v597 = vadd.f32 %v596, %v459
      %v598 = vadd.f32 %v597, %v464
      %v599 = vadd.f32 %v598, %v467
      %v600 = vadd.f32 %v599, %v472
      %v601 = vadd.f32 %v600, %v475
      %v602 = vadd.f32 %v601, %v480
      %v603 = vadd.f32 %v602, %v483
      %v604 = vadd.f32 %v603, %v488
      %v605 = vadd.f32 %v604, %v491
      %v606 = vadd.f32 %v605, %v496
      %v607 = vadd.f32 %v606, %v499
      %v608 = vadd.f32 %v607, %v504
      %v609 = vadd.f32 %v608, %v507
      %v610 = vadd.f32 %v609, %v512
      %v611 = vadd.f32 %v610, %v515
      %v612 = vadd.f32 %v611, %v520
      %v613 = vadd.f32 %v612, %v523
      %v614 = vadd.f32 %v613, %v528
      %v615 = vadd.f32 %v614, %v531
      %v616 = vadd.f32 %v615, %v536
      %v617 = vadd.f32 %v616, %v539
      %v618 = vadd.f32 %v617, %v544
      %v619 = vadd.f32 %v618, %v547
      %v620 = vrot.slane %v619, 4
      %v621 = vadd.f32 %v619, %v620
      %v622 = vrot.slane %v621, 2
      %v623 = vadd.f32 %v621, %v622
      %v624 = vrot.slane %v623, 1
      %v625 = vadd.f32 %v623, %v624
      %v626 = vadd.f32 %v588, %v625
      %627 = vst [vmem:[%s3] sm:$0x1] %v626
      %v628 = vld [vmem:[%s4] sm:$0x1]
      %v629 = vmul.f32 %v424, %v424
      %v630 = vmul.f32 %v427, %v427
      %v631 = vmul.f32 %v432, %v432
      %v632 = vmul.f32 %v435, %v435
      %v633 = vmul.f32 %v440, %v440
      %v634 = vmul.f32 %v443, %v443
      %v635 = vmul.f32 %v448, %v448
      %v636 = vmul.f32 %v451, %v451
      %v637 = vmul.f32 %v456, %v456
      %v638 = vmul.f32 %v459, %v459
      %v639 = vmul.f32 %v464, %v464
      %v640 = vmul.f32 %v467, %v467
      %v641 = vmul.f32 %v472, %v472
      %v642 = vmul.f32 %v475, %v475
      %v643 = vmul.f32 %v480, %v480
      %v644 = vmul.f32 %v483, %v483
      %v645 = vmul.f32 %v488, %v488
      %v646 = vmul.f32 %v491, %v491
      %v647 = vmul.f32 %v496, %v496
      %v648 = vmul.f32 %v499, %v499
      %v649 = vmul.f32 %v504, %v504
      %v650 = vmul.f32 %v507, %v507
      %v651 = vmul.f32 %v512, %v512
      %v652 = vmul.f32 %v515, %v515
      %v653 = vmul.f32 %v520, %v520
      %v654 = vmul.f32 %v523, %v523
      %v655 = vmul.f32 %v528, %v528
      %v656 = vmul.f32 %v531, %v531
      %v657 = vmul.f32 %v536, %v536
      %v658 = vmul.f32 %v539, %v539
      %v659 = vmul.f32 %v544, %v544
      %v660 = vmul.f32 %v547, %v547
      %v661 = vadd.f32 %v629, %v630
      %v662 = vadd.f32 %v661, %v631
      %v663 = vadd.f32 %v662, %v632
      %v664 = vadd.f32 %v663, %v633
      %v665 = vadd.f32 %v664, %v634
      %v666 = vadd.f32 %v665, %v635
      %v667 = vadd.f32 %v666, %v636
      %v668 = vadd.f32 %v667, %v637
      %v669 = vadd.f32 %v668, %v638
      %v670 = vadd.f32 %v669, %v639
      %v671 = vadd.f32 %v670, %v640
      %v672 = vadd.f32 %v671, %v641
      %v673 = vadd.f32 %v672, %v642
      %v674 = vadd.f32 %v673, %v643
      %v675 = vadd.f32 %v674, %v644
      %v676 = vadd.f32 %v675, %v645
      %v677 = vadd.f32 %v676, %v646
      %v678 = vadd.f32 %v677, %v647
      %v679 = vadd.f32 %v678, %v648
      %v680 = vadd.f32 %v679, %v649
      %v681 = vadd.f32 %v680, %v650
      %v682 = vadd.f32 %v681, %v651
      %v683 = vadd.f32 %v682, %v652
      %v684 = vadd.f32 %v683, %v653
      %v685 = vadd.f32 %v684, %v654
      %v686 = vadd.f32 %v685, %v655
      %v687 = vadd.f32 %v686, %v656
      %v688 = vadd.f32 %v687, %v657
      %v689 = vadd.f32 %v688, %v658
      %v690 = vadd.f32 %v689, %v659
      %v691 = vadd.f32 %v690, %v660
      %v692 = vrot.slane %v691, 4
      %v693 = vadd.f32 %v691, %v692
      %v694 = vrot.slane %v693, 2
      %v695 = vadd.f32 %v693, %v694
      %v696 = vrot.slane %v695, 1
      %v697 = vadd.f32 %v695, %v696
      %v698 = vadd.f32 %v628, %v697
      %699 = vst [vmem:[%s4] sm:$0x1] %v698
      %s700 = smul.u32 32, %s16
      %p701 = scmp.lt.s32.totalorder %s700, 63
      %s702 = scalar_select %p701, %s700, 63
      %s703 = smul.addr %s702, 8
      %s704 = scalar_lea.vmem %s2, %s703
      // Predicated region
      $region33: #{a_call__.6} parent=27 // pred_check
        %p705 = pneg %p81
      $region34: #{a_call__.6} parent=27 // pred_check_branch
        %707 = sbr.rel (%p705) target = $region36
      $region35: #{a_call__.6} parent=27 // pred_region
        %s708 = smul.u32 32, %s16
      $region36: #{a_call__.6} parent=27 // pred_fallthru
        _
      // Predicated region
      $region37: #{a_call__.6} parent=27 // pred_check
        %p709 = pneg %p102
      $region38: #{a_call__.6} parent=27 // pred_check_branch
        %711 = sbr.rel (%p709) target = $region40
      $region39: #{a_call__.6} parent=27 // pred_region
        _
      $region40: #{a_call__.6} parent=27 // pred_fallthru
        _
      // Predicated region
      $region41: #{a_call__.6} parent=27 // pred_check
        %p712 = pneg %p123
      $region42: #{a_call__.6} parent=27 // pred_check_branch
        %714 = sbr.rel (%p712) target = $region44
      $region43: #{a_call__.6} parent=27 // pred_region
        _
      $region44: #{a_call__.6} parent=27 // pred_fallthru
        _
      // Predicated region
      $region45: #{a_call__.6} parent=27 // pred_check
        %p715 = pneg %p102
      $region46: #{a_call__.6} parent=27 // pred_check_branch
        %717 = sbr.rel (%p715) target = $region48
      $region47: #{a_call__.6} parent=27 // pred_region
        _
      $region48: #{a_call__.6} parent=27 // pred_fallthru
        _
      // Predicated region
      $region49: #{a_call__.6} parent=27 // pred_check
        %p718 = pneg %p123
      $region50: #{a_call__.6} parent=27 // pred_check_branch
        %720 = sbr.rel (%p718) target = $region52
      $region51: #{a_call__.6} parent=27 // pred_region
        _
      $region52: #{a_call__.6} parent=27 // pred_fallthru
        _
    $region28: #{a_call__.6} parent=5 // pred_fallthru
      _
    %p721 = scmp.le.s32.totalorder 2, %s11
    // Predicated region
    $region53: #{a_call__.6} parent=5 // pred_check
      %p722 = pneg %p721
    $region54: #{a_call__.6} parent=5 // pred_check_branch
      %724 = sbr.rel (%p722) target = $region56
    $region55: #{a_call__.6} parent=5 // pred_region
      %s725 = ssub.s32 %s11, 2
      // Predicated region
      $region57: #{a_call__.6} parent=55 // pred_check
        %p726 = pneg %p87
      $region58: #{a_call__.6} parent=55 // pred_check_branch
        %728 = sbr.rel (%p726) target = $region60
      $region59: #{a_call__.6} parent=55 // pred_region
        %s729 = smul.u32 32, %s17
        %p730 = scmp.lt.s32.totalorder %s729, 63
        %s731 = scalar_select %p730, %s729, 63
        %s732 = smul.addr %s731, 8
        %s733 = scalar_lea.vmem %s2, %s732
      $region60: #{a_call__.6} parent=55 // pred_fallthru
        _
    $region56: #{a_call__.6} parent=5 // pred_fallthru
      _
  $region6: #{a_call__.6} parent=0 // loop_footer
    %s15 = sadd.s32 1, %s11
  $region7: #{a_call__.6} parent=0 // loop_footer_branch
    %10 = sbr.rel target = $region3
  $region8: #{a_call__.6} parent=0 // loop_exit
    _

// kernel: a_call__.7
$region0: #{a_call__.7}
  #allocation0 [shape = 'u32[]', space=smem, size = 0x4, offset = 0x4, fixed_abs, tag = 'smem constant byte address 0x4 - core index']
  #allocation1 [shape = 'u32[144,128]{1,0:T(1,128)}', space=vmem, size = 0x12000, scoped, tag = 'internal scratch']
  %s0 = inlined_call_operand.vmem [shape: f32[512,128], index: 0, kind: input, shape index: {}]
  %s1 = inlined_call_operand.vmem [shape: f32[1,128], index: 1, kind: input, shape index: {}]
  %s2 = inlined_call_operand.vmem [shape: f32[1,128], index: 2, kind: input, shape index: {}]
  %s3 = inlined_call_operand.vmem [shape: f32[512,128], index: 3, kind: output, shape index: {}]
  %s4 = sld [smem:[#allocation0]]
  $region45: #{a_call__.7} parent=0
    _
  %s6 = ssub.s32 1, %s4
  %s7 = scalar_select 0, %s6, %s4
  loop: start=0, step=1, limit=4
  $region2: #{a_call__.7} parent=0 // loop_pre_header
    _
  $region3: #{a_call__.7} parent=0 // loop_header
    %s9 = sphi 0, %s13
    %p10 = scmp.ge.s32.totalorder %s9, 4
    %s19 = sphi 0, %s21
    %s22 = sphi 0, %s19
    %s23 = sphi 0, %s22
    %s39 = sphi 0, %s23
    %s43 = sphi 0, %s43
    %s45 = sphi 0, %s43
    %s46 = sphi 0, %s45
    %s60 = sphi 0, %s46
    %s64 = sphi 0, %s64
    %s66 = sphi 0, %s64
    %s67 = sphi 0, %s66
    %s81 = sphi 0, %s67
    %s87 = sphi 0, %s89
    %s90 = sphi 0, %s87
    %s91 = sphi 0, %s90
    %s107 = sphi 0, %s91
  $region4: #{a_call__.7} parent=0 // loop_header_branch
    %12 = sbr.rel (%p10) target = $region8
  $region5: #{a_call__.7} parent=0 // loop_body
    %s14 = ssub.s32 %s9, 1
    %s15 = ssub.s32 %s9, 2
    %s16 = sadd.s32 %s9, 1
    %s17 = ssub.s32 %s9, %s16
    %p18 = scmp.eq.s32.totalorder %s17, 0
    %s20 = sadd.s32 %s19, 1
    %s21 = scalar_select %p18, %s19, %s20
    %p24 = pneg %p18
    %p25 = scmp.eq.s32.totalorder %s9, 1
    %p26 = por %p24, %p25
    %p27 = scmp.ne.s32.totalorder %s19, %s22
    %p28 = scmp.eq.s32.totalorder %s9, 0
    %p29 = por %p27, %p28
    %p30 = scmp.ne.s32.totalorder %s19, %s22
    %p31 = scmp.eq.s32.totalorder %s14, 1
    %p32 = por %p30, %p31
    %p33 = scmp.ne.s32.totalorder %s22, %s23
    %p34 = scmp.eq.s32.totalorder %s14, 0
    %p35 = por %p33, %p34
    %p36 = scmp.ne.s32.totalorder %s22, %s23
    %p37 = scmp.eq.s32.totalorder %s15, 1
    %p38 = por %p36, %p37
    %p40 = scmp.ne.s32.totalorder %s23, %s39
    %p41 = scmp.eq.s32.totalorder %s15, 0
    %p42 = por %p40, %p41
    %s44 = sadd.s32 %s43, 1
    %p47 = scmp.eq.s32.totalorder %s9, 1
    %p48 = scmp.ne.s32.totalorder %s43, %s45
    %p49 = scmp.eq.s32.totalorder %s9, 0
    %p50 = por %p48, %p49
    %p51 = scmp.ne.s32.totalorder %s43, %s45
    %p52 = scmp.eq.s32.totalorder %s14, 1
    %p53 = por %p51, %p52
    %p54 = scmp.ne.s32.totalorder %s45, %s46
    %p55 = scmp.eq.s32.totalorder %s14, 0
    %p56 = por %p54, %p55
    %p57 = scmp.ne.s32.totalorder %s45, %s46
    %p58 = scmp.eq.s32.totalorder %s15, 1
    %p59 = por %p57, %p58
    %p61 = scmp.ne.s32.totalorder %s46, %s60
    %p62 = scmp.eq.s32.totalorder %s15, 0
    %p63 = por %p61, %p62
    %s65 = sadd.s32 %s64, 1
    %p68 = scmp.eq.s32.totalorder %s9, 1
    %p69 = scmp.ne.s32.totalorder %s64, %s66
    %p70 = scmp.eq.s32.totalorder %s9, 0
    %p71 = por %p69, %p70
    %p72 = scmp.ne.s32.totalorder %s64, %s66
    %p73 = scmp.eq.s32.totalorder %s14, 1
    %p74 = por %p72, %p73
    %p75 = scmp.ne.s32.totalorder %s66, %s67
    %p76 = scmp.eq.s32.totalorder %s14, 0
    %p77 = por %p75, %p76
    %p78 = scmp.ne.s32.totalorder %s66, %s67
    %p79 = scmp.eq.s32.totalorder %s15, 1
    %p80 = por %p78, %p79
    %p82 = scmp.ne.s32.totalorder %s67, %s81
    %p83 = scmp.eq.s32.totalorder %s15, 0
    %p84 = por %p82, %p83
    %s85 = ssub.s32 %s9, %s16
    %p86 = scmp.eq.s32.totalorder %s85, 0
    %s88 = sadd.s32 %s87, 1
    %s89 = scalar_select %p86, %s87, %s88
    %p92 = pneg %p86
    %p93 = scmp.eq.s32.totalorder %s9, 1
    %p94 = por %p92, %p93
    %p95 = scmp.ne.s32.totalorder %s87, %s90
    %p96 = scmp.eq.s32.totalorder %s9, 0
    %p97 = por %p95, %p96
    %p98 = scmp.ne.s32.totalorder %s87, %s90
    %p99 = scmp.eq.s32.totalorder %s14, 1
    %p100 = por %p98, %p99
    %p101 = scmp.ne.s32.totalorder %s90, %s91
    %p102 = scmp.eq.s32.totalorder %s14, 0
    %p103 = por %p101, %p102
    %p104 = scmp.ne.s32.totalorder %s90, %s91
    %p105 = scmp.eq.s32.totalorder %s15, 1
    %p106 = por %p104, %p105
    %p108 = scmp.ne.s32.totalorder %s91, %s107
    %p109 = scmp.eq.s32.totalorder %s15, 0
    %p110 = por %p108, %p109
    %p111 = scmp.le.s32.totalorder 1, %s9
    %p112 = scmp.lt.s32.totalorder %s9, 3
    %p113 = pnand %p111, %p112
    %p114 = pneg %p113
    // Predicated region
    $region9: #{a_call__.7} parent=5 // pred_check
      _
    $region10: #{a_call__.7} parent=5 // pred_check_branch
      %116 = sbr.rel (%p113) target = $region12
    $region11: #{a_call__.7} parent=5 // pred_region
      %s117 = ssub.s32 %s9, 1
      // Predicated region
      $region13: #{a_call__.7} parent=11 // pred_check
        %p118 = pneg %p56
      $region14: #{a_call__.7} parent=11 // pred_check_branch
        %120 = sbr.rel (%p118) target = $region16
      $region15: #{a_call__.7} parent=11 // pred_region
        _
      $region16: #{a_call__.7} parent=11 // pred_fallthru
        _
      // Predicated region
      $region17: #{a_call__.7} parent=11 // pred_check
        %p121 = pneg %p77
      $region18: #{a_call__.7} parent=11 // pred_check_branch
        %123 = sbr.rel (%p121) target = $region20
      $region19: #{a_call__.7} parent=11 // pred_region
        _
      $region20: #{a_call__.7} parent=11 // pred_fallthru
        _
    $region12: #{a_call__.7} parent=5 // pred_fallthru
      _
    %p124 = scmp.lt.s32.totalorder %s9, 2
    // Predicated region
    $region21: #{a_call__.7} parent=5 // pred_check
      %p125 = pneg %p124
    $region22: #{a_call__.7} parent=5 // pred_check_branch
      %127 = sbr.rel (%p125) target = $region24
    $region23: #{a_call__.7} parent=5 // pred_region
      // Predicated region
      $region25: #{a_call__.7} parent=23 // pred_check
        %p128 = pneg %p29
      $region26: #{a_call__.7} parent=23 // pred_check_branch
        %130 = sbr.rel (%p128) target = $region28
      $region27: #{a_call__.7} parent=23 // pred_region
        %s131 = smul.u32 32, %s9
        %p132 = scmp.lt.s32.totalorder %s131, 63
        %s133 = scalar_select %p132, %s131, 63
        %s134 = smul.addr %s133, 8
        %s135 = scalar_lea.vmem %s0, %s134
        %s136 = smul.u32 32, %s9
      $region28: #{a_call__.7} parent=23 // pred_fallthru
        _
    $region24: #{a_call__.7} parent=5 // pred_fallthru
      _
    %p137 = scmp.le.s32.totalorder 1, %s9
    %p138 = scmp.lt.s32.totalorder %s9, 3
    %p139 = pnand %p137, %p138
    %p140 = pneg %p139
    // Predicated region
    $region29: #{a_call__.7} parent=5 // pred_check
      _
    $region30: #{a_call__.7} parent=5 // pred_check_branch
      %142 = sbr.rel (%p139) target = $region32
    $region31: #{a_call__.7} parent=5 // pred_region
      %s143 = ssub.s32 %s9, 1
      %s144 = smul.u32 32, %s14
      %p145 = scmp.lt.s32.totalorder %s144, 63
      %s146 = scalar_select %p145, %s144, 63
      %s147 = smul.addr %s146, 8
      %s148 = scalar_lea.vmem %s0, %s147
      %p149 = pneg %p35
      %p150 = pneg %p32
      %p151 = pneg %p56
      %p152 = pneg %p53
      %p153 = pneg %p77
      %p154 = pneg %p74
      %p155 = pneg %p103
      %p156 = pneg %p100
      %s157 = smul.u32 32, %s14
      %p158 = scmp.lt.s32.totalorder %s157, 63
      %s159 = scalar_select %p158, %s157, 63
      %s160 = smul.addr %s159, 8
      %s161 = scalar_lea.vmem %s3, %s160
      %s162 = smul.u32 32, %s14
      %p163 = scmp.lt.s32.totalorder %s162, 63
      %s164 = scalar_select %p163, %s162, 63
      %s165 = smul.addr %s164, 8
      %s166 = scalar_lea.vmem %s0, %s165
      %s167 = smul.u32 32, %s14
      %s168 = smul.u32 32, %s14
      %p169 = scmp.lt.s32.totalorder %s168, 63
      %s170 = scalar_select %p169, %s168, 63
      %s171 = smul.addr %s170, 8
      %s172 = scalar_lea.vmem %s3, %s171
      %s173 = smul.u32 32, %s14
      %v174 = vld [vmem:[%s166] sm:$0xff]
      %v175 = vld [vmem:[%s166 + $0x8] sm:$0xff]
      %v176 = vld [vmem:[%s166 + $0x10] sm:$0xff]
      %v177 = vld [vmem:[%s166 + $0x18] sm:$0xff]
      %v178 = vld [vmem:[%s166 + $0x20] sm:$0xff]
      %v179 = vld [vmem:[%s166 + $0x28] sm:$0xff]
      %v180 = vld [vmem:[%s166 + $0x30] sm:$0xff]
      %v181 = vld [vmem:[%s166 + $0x38] sm:$0xff]
      %v182 = vld [vmem:[%s166 + $0x40] sm:$0xff]
      %v183 = vld [vmem:[%s166 + $0x48] sm:$0xff]
      %v184 = vld [vmem:[%s166 + $0x50] sm:$0xff]
      %v185 = vld [vmem:[%s166 + $0x58] sm:$0xff]
      %v186 = vld [vmem:[%s166 + $0x60] sm:$0xff]
      %v187 = vld [vmem:[%s166 + $0x68] sm:$0xff]
      %v188 = vld [vmem:[%s166 + $0x70] sm:$0xff]
      %v189 = vld [vmem:[%s166 + $0x78] sm:$0xff]
      %v190 = vld [vmem:[%s166 + $0x80] sm:$0xff]
      %v191 = vld [vmem:[%s166 + $0x88] sm:$0xff]
      %v192 = vld [vmem:[%s166 + $0x90] sm:$0xff]
      %v193 = vld [vmem:[%s166 + $0x98] sm:$0xff]
      %v194 = vld [vmem:[%s166 + $0xa0] sm:$0xff]
      %v195 = vld [vmem:[%s166 + $0xa8] sm:$0xff]
      %v196 = vld [vmem:[%s166 + $0xb0] sm:$0xff]
      %v197 = vld [vmem:[%s166 + $0xb8] sm:$0xff]
      %v198 = vld [vmem:[%s166 + $0xc0] sm:$0xff]
      %v199 = vld [vmem:[%s166 + $0xc8] sm:$0xff]
      %v200 = vld [vmem:[%s166 + $0xd0] sm:$0xff]
      %v201 = vld [vmem:[%s166 + $0xd8] sm:$0xff]
      %v202 = vld [vmem:[%s166 + $0xe0] sm:$0xff]
      %v203 = vld [vmem:[%s166 + $0xe8] sm:$0xff]
      %v204 = vld [vmem:[%s166 + $0xf0] sm:$0xff]
      %v205 = vld [vmem:[%s166 + $0xf8] sm:$0xff]
      %v206 = vld [vmem:[%s1] sm:$0x1]
      %v208 = vlaneseq
      %v209 = vshrl.u32 %v208, 7
      %v210 = vsub.s32 0, %v209
      %v211 = vrot.slane %v206, %v210
      %v213 = vmul.f32 %v174, %v211
      %v214 = vmul.f32 %v175, %v211
      %v215 = vmul.f32 %v176, %v211
      %v216 = vmul.f32 %v177, %v211
      %v217 = vmul.f32 %v178, %v211
      %v218 = vmul.f32 %v179, %v211
      %v219 = vmul.f32 %v180, %v211
      %v220 = vmul.f32 %v181, %v211
      %v221 = vmul.f32 %v182, %v211
      %v222 = vmul.f32 %v183, %v211
      %v223 = vmul.f32 %v184, %v211
      %v224 = vmul.f32 %v185, %v211
      %v225 = vmul.f32 %v186, %v211
      %v226 = vmul.f32 %v187, %v211
      %v227 = vmul.f32 %v188, %v211
      %v228 = vmul.f32 %v189, %v211
      %v229 = vmul.f32 %v190, %v211
      %v230 = vmul.f32 %v191, %v211
      %v231 = vmul.f32 %v192, %v211
      %v232 = vmul.f32 %v193, %v211
      %v233 = vmul.f32 %v194, %v211
      %v234 = vmul.f32 %v195, %v211
      %v235 = vmul.f32 %v196, %v211
      %v236 = vmul.f32 %v197, %v211
      %v237 = vmul.f32 %v198, %v211
      %v238 = vmul.f32 %v199, %v211
      %v239 = vmul.f32 %v200, %v211
      %v240 = vmul.f32 %v201, %v211
      %v241 = vmul.f32 %v202, %v211
      %v242 = vmul.f32 %v203, %v211
      %v243 = vmul.f32 %v204, %v211
      %v244 = vmul.f32 %v205, %v211
      %v245 = vld [vmem:[%s2] sm:$0x1]
      %v247 = vlaneseq
      %v248 = vshrl.u32 %v247, 7
      %v249 = vsub.s32 0, %v248
      %v250 = vrot.slane %v245, %v249
      %v252 = vadd.f32 %v213, %v250
      %v253 = vadd.f32 %v214, %v250
      %v254 = vadd.f32 %v215, %v250
      %v255 = vadd.f32 %v216, %v250
      %v256 = vadd.f32 %v217, %v250
      %v257 = vadd.f32 %v218, %v250
      %v258 = vadd.f32 %v219, %v250
      %v259 = vadd.f32 %v220, %v250
      %v260 = vadd.f32 %v221, %v250
      %v261 = vadd.f32 %v222, %v250
      %v262 = vadd.f32 %v223, %v250
      %v263 = vadd.f32 %v224, %v250
      %v264 = vadd.f32 %v225, %v250
      %v265 = vadd.f32 %v226, %v250
      %v266 = vadd.f32 %v227, %v250
      %v267 = vadd.f32 %v228, %v250
      %v268 = vadd.f32 %v229, %v250
      %v269 = vadd.f32 %v230, %v250
      %v270 = vadd.f32 %v231, %v250
      %v271 = vadd.f32 %v232, %v250
      %v272 = vadd.f32 %v233, %v250
      %v273 = vadd.f32 %v234, %v250
      %v274 = vadd.f32 %v235, %v250
      %v275 = vadd.f32 %v236, %v250
      %v276 = vadd.f32 %v237, %v250
      %v277 = vadd.f32 %v238, %v250
      %v278 = vadd.f32 %v239, %v250
      %v279 = vadd.f32 %v240, %v250
      %v280 = vadd.f32 %v241, %v250
      %v281 = vadd.f32 %v242, %v250
      %v282 = vadd.f32 %v243, %v250
      %v283 = vadd.f32 %v244, %v250
      %v284 = vmax.f32 %v252, 0.0
      %v285 = vmax.f32 %v253, 0.0
      %v286 = vmax.f32 %v254, 0.0
      %v287 = vmax.f32 %v255, 0.0
      %v288 = vmax.f32 %v256, 0.0
      %v289 = vmax.f32 %v257, 0.0
      %v290 = vmax.f32 %v258, 0.0
      %v291 = vmax.f32 %v259, 0.0
      %v292 = vmax.f32 %v260, 0.0
      %v293 = vmax.f32 %v261, 0.0
      %v294 = vmax.f32 %v262, 0.0
      %v295 = vmax.f32 %v263, 0.0
      %v296 = vmax.f32 %v264, 0.0
      %v297 = vmax.f32 %v265, 0.0
      %v298 = vmax.f32 %v266, 0.0
      %v299 = vmax.f32 %v267, 0.0
      %v300 = vmax.f32 %v268, 0.0
      %v301 = vmax.f32 %v269, 0.0
      %v302 = vmax.f32 %v270, 0.0
      %v303 = vmax.f32 %v271, 0.0
      %v304 = vmax.f32 %v272, 0.0
      %v305 = vmax.f32 %v273, 0.0
      %v306 = vmax.f32 %v274, 0.0
      %v307 = vmax.f32 %v275, 0.0
      %v308 = vmax.f32 %v276, 0.0
      %v309 = vmax.f32 %v277, 0.0
      %v310 = vmax.f32 %v278, 0.0
      %v311 = vmax.f32 %v279, 0.0
      %v312 = vmax.f32 %v280, 0.0
      %v313 = vmax.f32 %v281, 0.0
      %v314 = vmax.f32 %v282, 0.0
      %v315 = vmax.f32 %v283, 0.0
      %316 = vst [vmem:[%s172] sm:$0xff] %v284
      %317 = vst [vmem:[%s172 + $0x8] sm:$0xff] %v285
      %318 = vst [vmem:[%s172 + $0x10] sm:$0xff] %v286
      %319 = vst [vmem:[%s172 + $0x18] sm:$0xff] %v287
      %320 = vst [vmem:[%s172 + $0x20] sm:$0xff] %v288
      %321 = vst [vmem:[%s172 + $0x28] sm:$0xff] %v289
      %322 = vst [vmem:[%s172 + $0x30] sm:$0xff] %v290
      %323 = vst [vmem:[%s172 + $0x38] sm:$0xff] %v291
      %324 = vst [vmem:[%s172 + $0x40] sm:$0xff] %v292
      %325 = vst [vmem:[%s172 + $0x48] sm:$0xff] %v293
      %326 = vst [vmem:[%s172 + $0x50] sm:$0xff] %v294
      %327 = vst [vmem:[%s172 + $0x58] sm:$0xff] %v295
      %328 = vst [vmem:[%s172 + $0x60] sm:$0xff] %v296
      %329 = vst [vmem:[%s172 + $0x68] sm:$0xff] %v297
      %330 = vst [vmem:[%s172 + $0x70] sm:$0xff] %v298
      %331 = vst [vmem:[%s172 + $0x78] sm:$0xff] %v299
      %332 = vst [vmem:[%s172 + $0x80] sm:$0xff] %v300
      %333 = vst [vmem:[%s172 + $0x88] sm:$0xff] %v301
      %334 = vst [vmem:[%s172 + $0x90] sm:$0xff] %v302
      %335 = vst [vmem:[%s172 + $0x98] sm:$0xff] %v303
      %336 = vst [vmem:[%s172 + $0xa0] sm:$0xff] %v304
      %337 = vst [vmem:[%s172 + $0xa8] sm:$0xff] %v305
      %338 = vst [vmem:[%s172 + $0xb0] sm:$0xff] %v306
      %339 = vst [vmem:[%s172 + $0xb8] sm:$0xff] %v307
      %340 = vst [vmem:[%s172 + $0xc0] sm:$0xff] %v308
      %341 = vst [vmem:[%s172 + $0xc8] sm:$0xff] %v309
      %342 = vst [vmem:[%s172 + $0xd0] sm:$0xff] %v310
      %343 = vst [vmem:[%s172 + $0xd8] sm:$0xff] %v311
      %344 = vst [vmem:[%s172 + $0xe0] sm:$0xff] %v312
      %345 = vst [vmem:[%s172 + $0xe8] sm:$0xff] %v313
      %346 = vst [vmem:[%s172 + $0xf0] sm:$0xff] %v314
      %347 = vst [vmem:[%s172 + $0xf8] sm:$0xff] %v315
      %s348 = smul.u32 32, %s14
      %p349 = scmp.lt.s32.totalorder %s348, 63
      %s350 = scalar_select %p349, %s348, 63
      %s351 = smul.addr %s350, 8
      %s352 = scalar_lea.vmem %s3, %s351
      // Predicated region
      $region33: #{a_call__.7} parent=31 // pred_check
        %p353 = pneg %p100
      $region34: #{a_call__.7} parent=31 // pred_check_branch
        %355 = sbr.rel (%p353) target = $region36
      $region35: #{a_call__.7} parent=31 // pred_region
        %s356 = smul.u32 32, %s14
      $region36: #{a_call__.7} parent=31 // pred_fallthru
        _
    $region32: #{a_call__.7} parent=5 // pred_fallthru
      _
    %p357 = scmp.le.s32.totalorder 2, %s9
    // Predicated region
    $region37: #{a_call__.7} parent=5 // pred_check
      %p358 = pneg %p357
    $region38: #{a_call__.7} parent=5 // pred_check_branch
      %360 = sbr.rel (%p358) target = $region40
    $region39: #{a_call__.7} parent=5 // pred_region
      %s361 = ssub.s32 %s9, 2
      // Predicated region
      $region41: #{a_call__.7} parent=39 // pred_check
        %p362 = pneg %p106
      $region42: #{a_call__.7} parent=39 // pred_check_branch
        %364 = sbr.rel (%p362) target = $region44
      $region43: #{a_call__.7} parent=39 // pred_region
        %s365 = smul.u32 32, %s15
        %p366 = scmp.lt.s32.totalorder %s365, 63
        %s367 = scalar_select %p366, %s365, 63
        %s368 = smul.addr %s367, 8
        %s369 = scalar_lea.vmem %s3, %s368
      $region44: #{a_call__.7} parent=39 // pred_fallthru
        _
    $region40: #{a_call__.7} parent=5 // pred_fallthru
      _
  $region6: #{a_call__.7} parent=0 // loop_footer
    %s13 = sadd.s32 1, %s9
  $region7: #{a_call__.7} parent=0 // loop_footer_branch
    %8 = sbr.rel target = $region3
  $region8: #{a_call__.7} parent=0 // loop_exit
    _

</llo_original>
